<compile_context>
chip_gen: v7x
topology: tpu7x:2x2x1
jax: 0.10.0
libtpu: 0.0.40
codegen_flags: <defaults>
</compile_context>

<pallas_src>
import functools

import jax
import jax.numpy as jnp
import numpy as np
from jax.experimental import pallas as pl
from jax.experimental.pallas import tpu as pltpu


# --------------------------------------------------------------------------
# Geometry of the "wide-flat" layout.
#
# The (padded) input image is phase-decomposed by the stride and each phase is
# flattened row-major with row width Wq = Wo + 2.  In this layout the 3x3 tap
# (dy, dx) needed by output pixel q = i*Wq + j is simply the contiguous slice
# [start, start + Ho*Wq) of the flattened phase, so every conv becomes 9 plain
# 2-D matmuls with static contiguous slices (no strided loads, no reshapes).
# Columns j >= Wo of the wide output are garbage and are dropped afterwards.
# --------------------------------------------------------------------------
def _geometry(H, W, stride):
    Ho, Wo = H // stride, W // stride
    Wq = Wo + 2                       # wide row width (== padded-h1 row width)
    Rq = (H + 2) // stride            # rows per phase image
    R = Rq * Wq + 8                   # rows per flattened phase (+ slack so the
                                      #  tap slices never run past the end)
    R2 = Ho * Wq                      # wide output rows; cols j < Wo are valid
    Rh = (Ho + 2) * Wq + 8            # padded-h1 VMEM scratch rows
    return Ho, Wo, Wq, R, R2, Rh


def _fold_bn(bn, eps=1e-5):
    scale = bn["gamma"] / jnp.sqrt(bn["var"] + eps)
    bias = bn["beta"] - bn["mean"] * scale
    return scale, bias


# --------------------------------------------------------------------------
# Fused residual-block kernel (one image per grid step).
# --------------------------------------------------------------------------
def _make_block_kernel(*, stride, H, W, Cin, Cout, has_projection):
    Ho, Wo, Wq, R, R2, Rh = _geometry(H, W, stride)

    # conv1 tap -> flat start offset into the phase-decomposed input.
    starts1 = []
    for dy in range(3):
        for dx in range(3):
            if stride == 1:
                p, off = 0, dy * Wq + dx
            else:  # stride 2: phase (dy%2, dx%2), intra-phase shift (dy//2, dx//2)
                p, off = (dy % 2) * 2 + (dx % 2), (dy // 2) * Wq + (dx // 2)
            starts1.append(p * R + off)
    # shortcut input x[stride*i, stride*j] in wide coordinates q = i*Wq + j:
    sc_start = (0 * R + Wq + 1) if stride == 1 else (3 * R + 0)

    def kernel(*refs):
        if has_projection:
            (x_ref, w1_ref, w2_ref, wsc_ref, b1_ref, b2_ref, mask_ref,
             o_ref, h1p_ref) = refs
        else:
            (x_ref, w1_ref, w2_ref, b1_ref, b2_ref, mask_ref,
             o_ref, h1p_ref) = refs

        # ---- conv1 (3x3, stride) + BN1 + ReLU : 9 shifted matmuls -----------
        acc1 = jnp.zeros((R2, Cout), jnp.float32)
        for t, s0 in enumerate(starts1):
            a = x_ref[0, s0:s0 + R2, :].astype(jnp.bfloat16)
            acc1 = acc1 + jnp.dot(a, w1_ref[t],
                                  preferred_element_type=jnp.float32)
        # mask zeroes the garbage columns (j >= Wo) so they do not corrupt the
        # halo padding of the h1 scratch.
        h1 = jnp.maximum(acc1 + b1_ref[...], 0.0) * mask_ref[...]

        # ---- h1 stays in VMEM: zero-padded halo scratch, no HBM round trip --
        h1p_ref[...] = jnp.zeros((Rh, Cout), jnp.float32)
        h1p_ref[Wq + 1:Wq + 1 + R2, :] = h1

        # ---- conv2 (3x3, stride 1) + BN2 : 9 shifted matmuls on VMEM --------
        acc2 = jnp.zeros((R2, Cout), jnp.float32)
        for dy in range(3):
            for dx in range(3):
                s0 = dy * Wq + dx
                a = h1p_ref[s0:s0 + R2, :].astype(jnp.bfloat16)
                acc2 = acc2 + jnp.dot(a, w2_ref[dy * 3 + dx],
                                      preferred_element_type=jnp.float32)

        # ---- shortcut + residual add + final ReLU, all in the f32 epilogue --
        if has_projection:
            xs = x_ref[0, sc_start:sc_start + R2, :].astype(jnp.bfloat16)
            sc = jnp.dot(xs, wsc_ref[...], preferred_element_type=jnp.float32)
        else:
            sc = x_ref[0, sc_start:sc_start + R2, :]      # identity path, f32

        out = jnp.maximum(acc2 + b2_ref[...] + sc, 0.0)
        o_ref[0] = out.astype(o_ref.dtype)

    return kernel


# --------------------------------------------------------------------------
# Wrapper: host-side layout prep (one fused XLA pass) + pallas_call.
# --------------------------------------------------------------------------
def residual_block_forward(x_nchw, params, stride, *, out_dtype=jnp.float32):
    N, Cin, H, W = x_nchw.shape
    Cout = params["w1"].shape[0]
    has_projection = "w_sc" in params
    if not has_projection:
        assert stride == 1 and Cin == Cout, \
            "identity shortcut requires stride == 1 and Cin == Cout"
    if stride != 1:
        assert stride == 2 and H % 2 == 0 and W % 2 == 0, \
            "only stride in {1, 2} with even H, W is supported"

    Ho, Wo, Wq, R, R2, Rh = _geometry(H, W, stride)

    # ---- single fused prep pass: NCHW->NHWC, pad, phase-decompose, flatten ----
    x = jnp.transpose(x_nchw, (0, 2, 3, 1)).astype(jnp.float32)   # (N,H,W,Cin)
    if stride == 1:
        xp = jnp.pad(x, ((0, 0), (1, 1), (1, 1), (0, 0)))         # (N,H+2,W+2,C)
        phases = xp[:, None]                                      # (N,1,H+2,W+2,C)
    else:
        xp = jnp.pad(x, ((0, 0), (1, 1), (1, 3), (0, 0)))         # (N,H+2,W+4,C)
        phases = jnp.stack([xp[:, py::2, px::2, :]
                            for py in (0, 1) for px in (0, 1)], axis=1)
    Pn, Rq = phases.shape[1], phases.shape[2]
    assert phases.shape[3] == Wq and Rq * Wq + 8 == R
    xflat = phases.reshape(N, Pn, Rq * Wq, Cin)
    xflat = jnp.pad(xflat, ((0, 0), (0, 0), (0, 8), (0, 0)))      # + slack rows
    xflat = xflat.reshape(N, Pn * R, Cin)                         # f32 (exact residual)

    # ---- fold BatchNorm (eval-mode running stats) into the conv weights ------
    s1, b1 = _fold_bn(params["bn1"])
    w1 = (jnp.transpose(params["w1"], (2, 3, 1, 0)).reshape(9, Cin, Cout)
          * s1[None, None, :]).astype(jnp.bfloat16)
    s2, b2 = _fold_bn(params["bn2"])
    w2 = (jnp.transpose(params["w2"], (2, 3, 1, 0)).reshape(9, Cout, Cout)
          * s2[None, None, :]).astype(jnp.bfloat16)
    if has_projection:
        ssc, bsc = _fold_bn(params["bn_sc"])
        wsc = (params["w_sc"].reshape(Cout, Cin).T * ssc[None, :]).astype(jnp.bfloat16)
        bias2 = (b2 + bsc).reshape(1, Cout).astype(jnp.float32)
    else:
        wsc = None
        bias2 = b2.reshape(1, Cout).astype(jnp.float32)
    b1 = b1.reshape(1, Cout).astype(jnp.float32)

    # validity mask over the wide rows: 1.0 where (q mod Wq) < Wo
    mask = (jnp.arange(R2) % Wq < Wo).astype(jnp.float32).reshape(R2, 1)

    # ---- per-image VMEM working set: tiny; stays under every chip's scoped
    #      default (16 MiB on v5e), so no generation-specific budget is needed.
    vmem_est = (2 * Pn * R * Cin * 4                       # input block (dbl-buffered)
                + 2 * R2 * Cout * jnp.dtype(out_dtype).itemsize
                + (9 * Cin + 9 * Cout + Cin) * Cout * 2    # bf16 weights
                + 2 * Cout * 4 + R2 * 4                    # biases + mask
                + Rh * Cout * 4                            # h1 halo scratch
                + 6 * R2 * Cout * 4)                       # f32 temporaries
    assert vmem_est < 12 * 1024 * 1024, \
        "per-image working set exceeds VMEM budget; tile the spatial dim"

    kernel = _make_block_kernel(stride=stride, H=H, W=W, Cin=Cin, Cout=Cout,
                                has_projection=has_projection)

    in_specs = [pl.BlockSpec((1, Pn * R, Cin), lambda b: (b, 0, 0)),   # phases
                pl.BlockSpec((9, Cin, Cout), lambda b: (0, 0, 0)),     # w1 (resident)
                pl.BlockSpec((9, Cout, Cout), lambda b: (0, 0, 0))]    # w2 (resident)
    args = [xflat, w1, w2]
    if has_projection:
        in_specs.append(pl.BlockSpec((Cin, Cout), lambda b: (0, 0)))   # w_sc
        args.append(wsc)
    in_specs += [pl.BlockSpec((1, Cout), lambda b: (0, 0)),            # b1
                 pl.BlockSpec((1, Cout), lambda b: (0, 0)),            # b2 (+b_sc)
                 pl.BlockSpec((R2, 1), lambda b: (0, 0))]              # column mask
    args += [b1, bias2, mask]

    out_wide = pl.pallas_call(
        kernel,
        out_shape=jax.ShapeDtypeStruct((N, R2, Cout), out_dtype),
        grid=(N,),
        in_specs=in_specs,
        out_specs=pl.BlockSpec((1, R2, Cout), lambda b: (b, 0, 0)),
        scratch_shapes=[pltpu.VMEM((Rh, Cout), jnp.float32)],          # h1 halo
        compiler_params=pltpu.CompilerParams(
            dimension_semantics=("parallel",)),                        # v7x: 2 TCs
    )(*args)

    # drop the garbage columns and go back to NCHW (one fused XLA pass).
    out = out_wide.reshape(N, Ho, Wq, Cout)[:, :, :Wo, :]
    return jnp.transpose(out, (0, 3, 1, 2)).astype(jnp.float32)


# --------------------------------------------------------------------------
# Pure-JAX reference (eval-mode BN) for verification
# --------------------------------------------------------------------------
def ref_forward(x_nchw, params, stride):
    def conv(x, w, s, pad):
        return jax.lax.conv_general_dilated(
            x, w, window_strides=(s, s), padding=[(pad, pad), (pad, pad)],
            dimension_numbers=("NCHW", "OIHW", "NCHW"))

    def bn(x, p):
        sc = p["gamma"] / jnp.sqrt(p["var"] + 1e-5)
        bi = p["beta"] - p["mean"] * sc
        return x * sc[None, :, None, None] + bi[None, :, None, None]

    left = jnp.maximum(bn(conv(x_nchw, params["w1"], stride, 1), params["bn1"]), 0.0)
    left = bn(conv(left, params["w2"], 1, 1), params["bn2"])
    if "w_sc" in params:
        sc = bn(conv(x_nchw, params["w_sc"], stride, 0), params["bn_sc"])
    else:
        sc = x_nchw
    return jnp.maximum(left + sc, 0.0)


# --------------------------------------------------------------------------
# Deterministic parameter construction
# --------------------------------------------------------------------------
def make_params(key, inchannel, outchannel, stride):
    ks = jax.random.split(key, 16)

    def bn_params(k, c):
        k1, k2, k3, k4 = jax.random.split(k, 4)
        return {
            "gamma": jax.random.uniform(k1, (c,), jnp.float32, 0.5, 1.5),
            "beta": jax.random.normal(k2, (c,), jnp.float32) * 0.1,
            "mean": jax.random.normal(k3, (c,), jnp.float32) * 0.1,
            "var": jax.random.uniform(k4, (c,), jnp.float32, 0.5, 1.5),
        }

    params = {
        "w1": jax.random.normal(ks[0], (outchannel, inchannel, 3, 3), jnp.float32) * 0.2,
        "bn1": bn_params(ks[1], outchannel),
        "w2": jax.random.normal(ks[2], (outchannel, outchannel, 3, 3), jnp.float32) * 0.2,
        "bn2": bn_params(ks[3], outchannel),
    }
    if stride != 1 or inchannel != outchannel:
        params["w_sc"] = jax.random.normal(
            ks[4], (outchannel, inchannel, 1, 1), jnp.float32) * 0.2
        params["bn_sc"] = bn_params(ks[5], outchannel)
    return params


# --------------------------------------------------------------------------
if __name__ == "__main__":
    key = jax.random.PRNGKey(0)
    kx, kp1, kp2 = jax.random.split(key, 3)

    # bf16 MXU operands (f32 accumulation / epilogue) -> looser-than-f32 tolerance.
    RTOL, ATOL = 5e-2, 5e-2

    # Case 1: downsampling block (stride=2, Cin != Cout) -> conv1x1 projection shortcut
    N, Cin, H, W = 2, 4, 16, 16
    Cout, stride = 8, 2
    x = jax.random.normal(kx, (N, Cin, H, W), jnp.float32)
    params = make_params(kp1, Cin, Cout, stride)

    out = jax.jit(functools.partial(residual_block_forward,
                                    params=params, stride=stride))(x)
    out = jax.block_until_ready(out)
    ref = ref_forward(x, params, stride)
    np.testing.assert_allclose(np.asarray(out), np.asarray(ref),
                               rtol=RTOL, atol=ATOL)

    # Case 2: identity-shortcut block (stride=1, Cin == Cout)
    Cin2 = Cout2 = 8
    x2 = jax.random.normal(kx, (N, Cin2, H, W), jnp.float32)
    params2 = make_params(kp2, Cin2, Cout2, 1)
    out2 = jax.jit(functools.partial(residual_block_forward,
                                     params=params2, stride=1))(x2)
    out2 = jax.block_until_ready(out2)
    ref2 = ref_forward(x2, params2, 1)
    np.testing.assert_allclose(np.asarray(out2), np.asarray(ref2),
                               rtol=RTOL, atol=ATOL)

    print("KERNEL_OK")
</pallas_src>

<mosaic_0001>
module attributes {stable_mosaic.version = 11 : i64} {
  func.func @kernel(%arg0: i32, %arg1: memref<1x392x4xf32, #tpu.memory_space<vmem>>, %arg2: memref<9x4x8xbf16, #tpu.memory_space<vmem>>, %arg3: memref<9x8x8xbf16, #tpu.memory_space<vmem>>, %arg4: memref<4x8xbf16, #tpu.memory_space<vmem>>, %arg5: memref<1x8xf32, #tpu.memory_space<vmem>>, %arg6: memref<1x8xf32, #tpu.memory_space<vmem>>, %arg7: memref<80x1xf32, #tpu.memory_space<vmem>>, %arg8: memref<1x80x8xf32, #tpu.memory_space<vmem>>, %arg9: memref<108x8xf32, #tpu.memory_space<vmem>>) attributes {dimension_semantics = [#tpu.dimension_semantics<parallel>], iteration_bounds = array<i64: 2>, scalar_prefetch = 0 : i64, scratch_operands = 1 : i64, tpu.core_type = #tpu.core_type<tc>, window_params = [{transform_indices = @transform_0, window_bounds = array<i64: 1, 392, 4>}, {pipeline_mode = #tpu.pipeline_mode<synchronous>, transform_indices = @transform_1, window_bounds = array<i64: 9, 4, 8>}, {pipeline_mode = #tpu.pipeline_mode<synchronous>, transform_indices = @transform_2, window_bounds = array<i64: 9, 8, 8>}, {pipeline_mode = #tpu.pipeline_mode<synchronous>, transform_indices = @transform_3, window_bounds = array<i64: 4, 8>}, {pipeline_mode = #tpu.pipeline_mode<synchronous>, transform_indices = @transform_4, window_bounds = array<i64: 1, 8>}, {pipeline_mode = #tpu.pipeline_mode<synchronous>, transform_indices = @transform_5, window_bounds = array<i64: 1, 8>}, {pipeline_mode = #tpu.pipeline_mode<synchronous>, transform_indices = @transform_6, window_bounds = array<i64: 80, 1>}, {transform_indices = @transform_7, window_bounds = array<i64: 1, 80, 8>}]} {
    %cst = arith.constant 0.000000e+00 : f32
    %0 = vector.broadcast %cst : f32 to vector<80x8xf32>
    %c0 = arith.constant 0 : index
    %c0_0 = arith.constant 0 : index
    %c0_1 = arith.constant 0 : index
    %1 = vector.load %arg1[%c0, %c0_0, %c0_1] : memref<1x392x4xf32, #tpu.memory_space<vmem>>, vector<1x80x4xf32>
    %2 = vector.shape_cast %1 : vector<1x80x4xf32> to vector<80x4xf32>
    %3 = arith.truncf %2 : vector<80x4xf32> to vector<80x4xbf16>
    %c0_2 = arith.constant 0 : index
    %c0_3 = arith.constant 0 : index
    %c0_4 = arith.constant 0 : index
    %4 = vector.load %arg2[%c0_2, %c0_3, %c0_4] : memref<9x4x8xbf16, #tpu.memory_space<vmem>>, vector<1x4x8xbf16>
    %5 = vector.shape_cast %4 : vector<1x4x8xbf16> to vector<4x8xbf16>
    %cst_5 = arith.constant dense<0.000000e+00> : vector<80x8xf32>
    %6 = tpu.matmul %3, %5, %cst_5 {dimension_numbers = #tpu.dot_dimension_numbers<[1], [0], [0], [1], [0, 0, 1, 1], [], []>} : vector<80x4xbf16>, vector<4x8xbf16>, vector<80x8xf32> -> vector<80x8xf32>
    %7 = arith.addf %0, %6 : vector<80x8xf32>
    %c0_6 = arith.constant 0 : index
    %c98 = arith.constant 98 : index
    %c0_7 = arith.constant 0 : index
    %8 = vector.load %arg1[%c0_6, %c98, %c0_7] : memref<1x392x4xf32, #tpu.memory_space<vmem>>, vector<1x80x4xf32>
    %9 = vector.shape_cast %8 : vector<1x80x4xf32> to vector<80x4xf32>
    %10 = arith.truncf %9 : vector<80x4xf32> to vector<80x4xbf16>
    %c1 = arith.constant 1 : index
    %c0_8 = arith.constant 0 : index
    %c0_9 = arith.constant 0 : index
    %11 = vector.load %arg2[%c1, %c0_8, %c0_9] : memref<9x4x8xbf16, #tpu.memory_space<vmem>>, vector<1x4x8xbf16>
    %12 = vector.shape_cast %11 : vector<1x4x8xbf16> to vector<4x8xbf16>
    %cst_10 = arith.constant dense<0.000000e+00> : vector<80x8xf32>
    %13 = tpu.matmul %10, %12, %cst_10 {dimension_numbers = #tpu.dot_dimension_numbers<[1], [0], [0], [1], [0, 0, 1, 1], [], []>} : vector<80x4xbf16>, vector<4x8xbf16>, vector<80x8xf32> -> vector<80x8xf32>
    %14 = arith.addf %7, %13 : vector<80x8xf32>
    %c0_11 = arith.constant 0 : index
    %c1_12 = arith.constant 1 : index
    %c0_13 = arith.constant 0 : index
    %15 = vector.load %arg1[%c0_11, %c1_12, %c0_13] : memref<1x392x4xf32, #tpu.memory_space<vmem>>, vector<1x80x4xf32>
    %16 = vector.shape_cast %15 : vector<1x80x4xf32> to vector<80x4xf32>
    %17 = arith.truncf %16 : vector<80x4xf32> to vector<80x4xbf16>
    %c2 = arith.constant 2 : index
    %c0_14 = arith.constant 0 : index
    %c0_15 = arith.constant 0 : index
    %18 = vector.load %arg2[%c2, %c0_14, %c0_15] : memref<9x4x8xbf16, #tpu.memory_space<vmem>>, vector<1x4x8xbf16>
    %19 = vector.shape_cast %18 : vector<1x4x8xbf16> to vector<4x8xbf16>
    %cst_16 = arith.constant dense<0.000000e+00> : vector<80x8xf32>
    %20 = tpu.matmul %17, %19, %cst_16 {dimension_numbers = #tpu.dot_dimension_numbers<[1], [0], [0], [1], [0, 0, 1, 1], [], []>} : vector<80x4xbf16>, vector<4x8xbf16>, vector<80x8xf32> -> vector<80x8xf32>
    %21 = arith.addf %14, %20 : vector<80x8xf32>
    %c0_17 = arith.constant 0 : index
    %c196 = arith.constant 196 : index
    %c0_18 = arith.constant 0 : index
    %22 = vector.load %arg1[%c0_17, %c196, %c0_18] : memref<1x392x4xf32, #tpu.memory_space<vmem>>, vector<1x80x4xf32>
    %23 = vector.shape_cast %22 : vector<1x80x4xf32> to vector<80x4xf32>
    %24 = arith.truncf %23 : vector<80x4xf32> to vector<80x4xbf16>
    %c3 = arith.constant 3 : index
    %c0_19 = arith.constant 0 : index
    %c0_20 = arith.constant 0 : index
    %25 = vector.load %arg2[%c3, %c0_19, %c0_20] : memref<9x4x8xbf16, #tpu.memory_space<vmem>>, vector<1x4x8xbf16>
    %26 = vector.shape_cast %25 : vector<1x4x8xbf16> to vector<4x8xbf16>
    %cst_21 = arith.constant dense<0.000000e+00> : vector<80x8xf32>
    %27 = tpu.matmul %24, %26, %cst_21 {dimension_numbers = #tpu.dot_dimension_numbers<[1], [0], [0], [1], [0, 0, 1, 1], [], []>} : vector<80x4xbf16>, vector<4x8xbf16>, vector<80x8xf32> -> vector<80x8xf32>
    %28 = arith.addf %21, %27 : vector<80x8xf32>
    %c0_22 = arith.constant 0 : index
    %c294 = arith.constant 294 : index
    %c0_23 = arith.constant 0 : index
    %29 = vector.load %arg1[%c0_22, %c294, %c0_23] : memref<1x392x4xf32, #tpu.memory_space<vmem>>, vector<1x80x4xf32>
    %30 = vector.shape_cast %29 : vector<1x80x4xf32> to vector<80x4xf32>
    %31 = arith.truncf %30 : vector<80x4xf32> to vector<80x4xbf16>
    %c4 = arith.constant 4 : index
    %c0_24 = arith.constant 0 : index
    %c0_25 = arith.constant 0 : index
    %32 = vector.load %arg2[%c4, %c0_24, %c0_25] : memref<9x4x8xbf16, #tpu.memory_space<vmem>>, vector<1x4x8xbf16>
    %33 = vector.shape_cast %32 : vector<1x4x8xbf16> to vector<4x8xbf16>
    %cst_26 = arith.constant dense<0.000000e+00> : vector<80x8xf32>
    %34 = tpu.matmul %31, %33, %cst_26 {dimension_numbers = #tpu.dot_dimension_numbers<[1], [0], [0], [1], [0, 0, 1, 1], [], []>} : vector<80x4xbf16>, vector<4x8xbf16>, vector<80x8xf32> -> vector<80x8xf32>
    %35 = arith.addf %28, %34 : vector<80x8xf32>
    %c0_27 = arith.constant 0 : index
    %c197 = arith.constant 197 : index
    %c0_28 = arith.constant 0 : index
    %36 = vector.load %arg1[%c0_27, %c197, %c0_28] : memref<1x392x4xf32, #tpu.memory_space<vmem>>, vector<1x80x4xf32>
    %37 = vector.shape_cast %36 : vector<1x80x4xf32> to vector<80x4xf32>
    %38 = arith.truncf %37 : vector<80x4xf32> to vector<80x4xbf16>
    %c5 = arith.constant 5 : index
    %c0_29 = arith.constant 0 : index
    %c0_30 = arith.constant 0 : index
    %39 = vector.load %arg2[%c5, %c0_29, %c0_30] : memref<9x4x8xbf16, #tpu.memory_space<vmem>>, vector<1x4x8xbf16>
    %40 = vector.shape_cast %39 : vector<1x4x8xbf16> to vector<4x8xbf16>
    %cst_31 = arith.constant dense<0.000000e+00> : vector<80x8xf32>
    %41 = tpu.matmul %38, %40, %cst_31 {dimension_numbers = #tpu.dot_dimension_numbers<[1], [0], [0], [1], [0, 0, 1, 1], [], []>} : vector<80x4xbf16>, vector<4x8xbf16>, vector<80x8xf32> -> vector<80x8xf32>
    %42 = arith.addf %35, %41 : vector<80x8xf32>
    %c0_32 = arith.constant 0 : index
    %c10 = arith.constant 10 : index
    %c0_33 = arith.constant 0 : index
    %43 = vector.load %arg1[%c0_32, %c10, %c0_33] : memref<1x392x4xf32, #tpu.memory_space<vmem>>, vector<1x80x4xf32>
    %44 = vector.shape_cast %43 : vector<1x80x4xf32> to vector<80x4xf32>
    %45 = arith.truncf %44 : vector<80x4xf32> to vector<80x4xbf16>
    %c6 = arith.constant 6 : index
    %c0_34 = arith.constant 0 : index
    %c0_35 = arith.constant 0 : index
    %46 = vector.load %arg2[%c6, %c0_34, %c0_35] : memref<9x4x8xbf16, #tpu.memory_space<vmem>>, vector<1x4x8xbf16>
    %47 = vector.shape_cast %46 : vector<1x4x8xbf16> to vector<4x8xbf16>
    %cst_36 = arith.constant dense<0.000000e+00> : vector<80x8xf32>
    %48 = tpu.matmul %45, %47, %cst_36 {dimension_numbers = #tpu.dot_dimension_numbers<[1], [0], [0], [1], [0, 0, 1, 1], [], []>} : vector<80x4xbf16>, vector<4x8xbf16>, vector<80x8xf32> -> vector<80x8xf32>
    %49 = arith.addf %42, %48 : vector<80x8xf32>
    %c0_37 = arith.constant 0 : index
    %c108 = arith.constant 108 : index
    %c0_38 = arith.constant 0 : index
    %50 = vector.load %arg1[%c0_37, %c108, %c0_38] : memref<1x392x4xf32, #tpu.memory_space<vmem>>, vector<1x80x4xf32>
    %51 = vector.shape_cast %50 : vector<1x80x4xf32> to vector<80x4xf32>
    %52 = arith.truncf %51 : vector<80x4xf32> to vector<80x4xbf16>
    %c7 = arith.constant 7 : index
    %c0_39 = arith.constant 0 : index
    %c0_40 = arith.constant 0 : index
    %53 = vector.load %arg2[%c7, %c0_39, %c0_40] : memref<9x4x8xbf16, #tpu.memory_space<vmem>>, vector<1x4x8xbf16>
    %54 = vector.shape_cast %53 : vector<1x4x8xbf16> to vector<4x8xbf16>
    %cst_41 = arith.constant dense<0.000000e+00> : vector<80x8xf32>
    %55 = tpu.matmul %52, %54, %cst_41 {dimension_numbers = #tpu.dot_dimension_numbers<[1], [0], [0], [1], [0, 0, 1, 1], [], []>} : vector<80x4xbf16>, vector<4x8xbf16>, vector<80x8xf32> -> vector<80x8xf32>
    %56 = arith.addf %49, %55 : vector<80x8xf32>
    %c0_42 = arith.constant 0 : index
    %c11 = arith.constant 11 : index
    %c0_43 = arith.constant 0 : index
    %57 = vector.load %arg1[%c0_42, %c11, %c0_43] : memref<1x392x4xf32, #tpu.memory_space<vmem>>, vector<1x80x4xf32>
    %58 = vector.shape_cast %57 : vector<1x80x4xf32> to vector<80x4xf32>
    %59 = arith.truncf %58 : vector<80x4xf32> to vector<80x4xbf16>
    %c8 = arith.constant 8 : index
    %c0_44 = arith.constant 0 : index
    %c0_45 = arith.constant 0 : index
    %60 = vector.load %arg2[%c8, %c0_44, %c0_45] : memref<9x4x8xbf16, #tpu.memory_space<vmem>>, vector<1x4x8xbf16>
    %61 = vector.shape_cast %60 : vector<1x4x8xbf16> to vector<4x8xbf16>
    %cst_46 = arith.constant dense<0.000000e+00> : vector<80x8xf32>
    %62 = tpu.matmul %59, %61, %cst_46 {dimension_numbers = #tpu.dot_dimension_numbers<[1], [0], [0], [1], [0, 0, 1, 1], [], []>} : vector<80x4xbf16>, vector<4x8xbf16>, vector<80x8xf32> -> vector<80x8xf32>
    %63 = arith.addf %56, %62 : vector<80x8xf32>
    %c0_47 = arith.constant 0 : index
    %c0_48 = arith.constant 0 : index
    %64 = vector.load %arg5[%c0_47, %c0_48] : memref<1x8xf32, #tpu.memory_space<vmem>>, vector<1x8xf32>
    %65 = vector.broadcast %64 : vector<1x8xf32> to vector<80x8xf32>
    %66 = arith.addf %63, %65 : vector<80x8xf32>
    %cst_49 = arith.constant 0.000000e+00 : f32
    %67 = vector.broadcast %cst_49 : f32 to vector<80x8xf32>
    %68 = arith.maximumf %66, %67 : vector<80x8xf32>
    %c0_50 = arith.constant 0 : index
    %c0_51 = arith.constant 0 : index
    %69 = vector.load %arg7[%c0_50, %c0_51] : memref<80x1xf32, #tpu.memory_space<vmem>>, vector<80x1xf32>
    %70 = vector.broadcast %69 : vector<80x1xf32> to vector<80x8xf32>
    %71 = arith.mulf %68, %70 : vector<80x8xf32>
    %cst_52 = arith.constant 0.000000e+00 : f32
    %72 = vector.broadcast %cst_52 : f32 to vector<108x8xf32>
    %c0_53 = arith.constant 0 : index
    %c0_54 = arith.constant 0 : index
    %73 = vector.load %arg9[%c0_53, %c0_54] : memref<108x8xf32, #tpu.memory_space<vmem>>, vector<108x8xf32>
    tpu.vector_store %arg9[%c0_53, %c0_54], %72 {strides = array<i32>} : memref<108x8xf32, #tpu.memory_space<vmem>>, vector<108x8xf32>,
    %c11_55 = arith.constant 11 : index
    %c0_56 = arith.constant 0 : index
    %74 = vector.load %arg9[%c11_55, %c0_56] : memref<108x8xf32, #tpu.memory_space<vmem>>, vector<80x8xf32>
    tpu.vector_store %arg9[%c11_55, %c0_56], %71 {strides = array<i32>} : memref<108x8xf32, #tpu.memory_space<vmem>>, vector<80x8xf32>,
    %cst_57 = arith.constant 0.000000e+00 : f32
    %75 = vector.broadcast %cst_57 : f32 to vector<80x8xf32>
    %c0_58 = arith.constant 0 : index
    %c0_59 = arith.constant 0 : index
    %76 = vector.load %arg9[%c0_58, %c0_59] : memref<108x8xf32, #tpu.memory_space<vmem>>, vector<80x8xf32>
    %77 = arith.truncf %76 : vector<80x8xf32> to vector<80x8xbf16>
    %c0_60 = arith.constant 0 : index
    %c0_61 = arith.constant 0 : index
    %c0_62 = arith.constant 0 : index
    %78 = vector.load %arg3[%c0_60, %c0_61, %c0_62] : memref<9x8x8xbf16, #tpu.memory_space<vmem>>, vector<1x8x8xbf16>
    %79 = vector.shape_cast %78 : vector<1x8x8xbf16> to vector<8x8xbf16>
    %cst_63 = arith.constant dense<0.000000e+00> : vector<80x8xf32>
    %80 = tpu.matmul %77, %79, %cst_63 {dimension_numbers = #tpu.dot_dimension_numbers<[1], [0], [0], [1], [0, 0, 1, 1], [], []>} : vector<80x8xbf16>, vector<8x8xbf16>, vector<80x8xf32> -> vector<80x8xf32>
    %81 = arith.addf %75, %80 : vector<80x8xf32>
    %c1_64 = arith.constant 1 : index
    %c0_65 = arith.constant 0 : index
    %82 = vector.load %arg9[%c1_64, %c0_65] : memref<108x8xf32, #tpu.memory_space<vmem>>, vector<80x8xf32>
    %83 = arith.truncf %82 : vector<80x8xf32> to vector<80x8xbf16>
    %c1_66 = arith.constant 1 : index
    %c0_67 = arith.constant 0 : index
    %c0_68 = arith.constant 0 : index
    %84 = vector.load %arg3[%c1_66, %c0_67, %c0_68] : memref<9x8x8xbf16, #tpu.memory_space<vmem>>, vector<1x8x8xbf16>
    %85 = vector.shape_cast %84 : vector<1x8x8xbf16> to vector<8x8xbf16>
    %cst_69 = arith.constant dense<0.000000e+00> : vector<80x8xf32>
    %86 = tpu.matmul %83, %85, %cst_69 {dimension_numbers = #tpu.dot_dimension_numbers<[1], [0], [0], [1], [0, 0, 1, 1], [], []>} : vector<80x8xbf16>, vector<8x8xbf16>, vector<80x8xf32> -> vector<80x8xf32>
    %87 = arith.addf %81, %86 : vector<80x8xf32>
    %c2_70 = arith.constant 2 : index
    %c0_71 = arith.constant 0 : index
    %88 = vector.load %arg9[%c2_70, %c0_71] : memref<108x8xf32, #tpu.memory_space<vmem>>, vector<80x8xf32>
    %89 = arith.truncf %88 : vector<80x8xf32> to vector<80x8xbf16>
    %c2_72 = arith.constant 2 : index
    %c0_73 = arith.constant 0 : index
    %c0_74 = arith.constant 0 : index
    %90 = vector.load %arg3[%c2_72, %c0_73, %c0_74] : memref<9x8x8xbf16, #tpu.memory_space<vmem>>, vector<1x8x8xbf16>
    %91 = vector.shape_cast %90 : vector<1x8x8xbf16> to vector<8x8xbf16>
    %cst_75 = arith.constant dense<0.000000e+00> : vector<80x8xf32>
    %92 = tpu.matmul %89, %91, %cst_75 {dimension_numbers = #tpu.dot_dimension_numbers<[1], [0], [0], [1], [0, 0, 1, 1], [], []>} : vector<80x8xbf16>, vector<8x8xbf16>, vector<80x8xf32> -> vector<80x8xf32>
    %93 = arith.addf %87, %92 : vector<80x8xf32>
    %c10_76 = arith.constant 10 : index
    %c0_77 = arith.constant 0 : index
    %94 = vector.load %arg9[%c10_76, %c0_77] : memref<108x8xf32, #tpu.memory_space<vmem>>, vector<80x8xf32>
    %95 = arith.truncf %94 : vector<80x8xf32> to vector<80x8xbf16>
    %c3_78 = arith.constant 3 : index
    %c0_79 = arith.constant 0 : index
    %c0_80 = arith.constant 0 : index
    %96 = vector.load %arg3[%c3_78, %c0_79, %c0_80] : memref<9x8x8xbf16, #tpu.memory_space<vmem>>, vector<1x8x8xbf16>
    %97 = vector.shape_cast %96 : vector<1x8x8xbf16> to vector<8x8xbf16>
    %cst_81 = arith.constant dense<0.000000e+00> : vector<80x8xf32>
    %98 = tpu.matmul %95, %97, %cst_81 {dimension_numbers = #tpu.dot_dimension_numbers<[1], [0], [0], [1], [0, 0, 1, 1], [], []>} : vector<80x8xbf16>, vector<8x8xbf16>, vector<80x8xf32> -> vector<80x8xf32>
    %99 = arith.addf %93, %98 : vector<80x8xf32>
    %c11_82 = arith.constant 11 : index
    %c0_83 = arith.constant 0 : index
    %100 = vector.load %arg9[%c11_82, %c0_83] : memref<108x8xf32, #tpu.memory_space<vmem>>, vector<80x8xf32>
    %101 = arith.truncf %100 : vector<80x8xf32> to vector<80x8xbf16>
    %c4_84 = arith.constant 4 : index
    %c0_85 = arith.constant 0 : index
    %c0_86 = arith.constant 0 : index
    %102 = vector.load %arg3[%c4_84, %c0_85, %c0_86] : memref<9x8x8xbf16, #tpu.memory_space<vmem>>, vector<1x8x8xbf16>
    %103 = vector.shape_cast %102 : vector<1x8x8xbf16> to vector<8x8xbf16>
    %cst_87 = arith.constant dense<0.000000e+00> : vector<80x8xf32>
    %104 = tpu.matmul %101, %103, %cst_87 {dimension_numbers = #tpu.dot_dimension_numbers<[1], [0], [0], [1], [0, 0, 1, 1], [], []>} : vector<80x8xbf16>, vector<8x8xbf16>, vector<80x8xf32> -> vector<80x8xf32>
    %105 = arith.addf %99, %104 : vector<80x8xf32>
    %c12 = arith.constant 12 : index
    %c0_88 = arith.constant 0 : index
    %106 = vector.load %arg9[%c12, %c0_88] : memref<108x8xf32, #tpu.memory_space<vmem>>, vector<80x8xf32>
    %107 = arith.truncf %106 : vector<80x8xf32> to vector<80x8xbf16>
    %c5_89 = arith.constant 5 : index
    %c0_90 = arith.constant 0 : index
    %c0_91 = arith.constant 0 : index
    %108 = vector.load %arg3[%c5_89, %c0_90, %c0_91] : memref<9x8x8xbf16, #tpu.memory_space<vmem>>, vector<1x8x8xbf16>
    %109 = vector.shape_cast %108 : vector<1x8x8xbf16> to vector<8x8xbf16>
    %cst_92 = arith.constant dense<0.000000e+00> : vector<80x8xf32>
    %110 = tpu.matmul %107, %109, %cst_92 {dimension_numbers = #tpu.dot_dimension_numbers<[1], [0], [0], [1], [0, 0, 1, 1], [], []>} : vector<80x8xbf16>, vector<8x8xbf16>, vector<80x8xf32> -> vector<80x8xf32>
    %111 = arith.addf %105, %110 : vector<80x8xf32>
    %c20 = arith.constant 20 : index
    %c0_93 = arith.constant 0 : index
    %112 = vector.load %arg9[%c20, %c0_93] : memref<108x8xf32, #tpu.memory_space<vmem>>, vector<80x8xf32>
    %113 = arith.truncf %112 : vector<80x8xf32> to vector<80x8xbf16>
    %c6_94 = arith.constant 6 : index
    %c0_95 = arith.constant 0 : index
    %c0_96 = arith.constant 0 : index
    %114 = vector.load %arg3[%c6_94, %c0_95, %c0_96] : memref<9x8x8xbf16, #tpu.memory_space<vmem>>, vector<1x8x8xbf16>
    %115 = vector.shape_cast %114 : vector<1x8x8xbf16> to vector<8x8xbf16>
    %cst_97 = arith.constant dense<0.000000e+00> : vector<80x8xf32>
    %116 = tpu.matmul %113, %115, %cst_97 {dimension_numbers = #tpu.dot_dimension_numbers<[1], [0], [0], [1], [0, 0, 1, 1], [], []>} : vector<80x8xbf16>, vector<8x8xbf16>, vector<80x8xf32> -> vector<80x8xf32>
    %117 = arith.addf %111, %116 : vector<80x8xf32>
    %c21 = arith.constant 21 : index
    %c0_98 = arith.constant 0 : index
    %118 = vector.load %arg9[%c21, %c0_98] : memref<108x8xf32, #tpu.memory_space<vmem>>, vector<80x8xf32>
    %119 = arith.truncf %118 : vector<80x8xf32> to vector<80x8xbf16>
    %c7_99 = arith.constant 7 : index
    %c0_100 = arith.constant 0 : index
    %c0_101 = arith.constant 0 : index
    %120 = vector.load %arg3[%c7_99, %c0_100, %c0_101] : memref<9x8x8xbf16, #tpu.memory_space<vmem>>, vector<1x8x8xbf16>
    %121 = vector.shape_cast %120 : vector<1x8x8xbf16> to vector<8x8xbf16>
    %cst_102 = arith.constant dense<0.000000e+00> : vector<80x8xf32>
    %122 = tpu.matmul %119, %121, %cst_102 {dimension_numbers = #tpu.dot_dimension_numbers<[1], [0], [0], [1], [0, 0, 1, 1], [], []>} : vector<80x8xbf16>, vector<8x8xbf16>, vector<80x8xf32> -> vector<80x8xf32>
    %123 = arith.addf %117, %122 : vector<80x8xf32>
    %c22 = arith.constant 22 : index
    %c0_103 = arith.constant 0 : index
    %124 = vector.load %arg9[%c22, %c0_103] : memref<108x8xf32, #tpu.memory_space<vmem>>, vector<80x8xf32>
    %125 = arith.truncf %124 : vector<80x8xf32> to vector<80x8xbf16>
    %c8_104 = arith.constant 8 : index
    %c0_105 = arith.constant 0 : index
    %c0_106 = arith.constant 0 : index
    %126 = vector.load %arg3[%c8_104, %c0_105, %c0_106] : memref<9x8x8xbf16, #tpu.memory_space<vmem>>, vector<1x8x8xbf16>
    %127 = vector.shape_cast %126 : vector<1x8x8xbf16> to vector<8x8xbf16>
    %cst_107 = arith.constant dense<0.000000e+00> : vector<80x8xf32>
    %128 = tpu.matmul %125, %127, %cst_107 {dimension_numbers = #tpu.dot_dimension_numbers<[1], [0], [0], [1], [0, 0, 1, 1], [], []>} : vector<80x8xbf16>, vector<8x8xbf16>, vector<80x8xf32> -> vector<80x8xf32>
    %129 = arith.addf %123, %128 : vector<80x8xf32>
    %c0_108 = arith.constant 0 : index
    %c294_109 = arith.constant 294 : index
    %c0_110 = arith.constant 0 : index
    %130 = vector.load %arg1[%c0_108, %c294_109, %c0_110] : memref<1x392x4xf32, #tpu.memory_space<vmem>>, vector<1x80x4xf32>
    %131 = vector.shape_cast %130 : vector<1x80x4xf32> to vector<80x4xf32>
    %132 = arith.truncf %131 : vector<80x4xf32> to vector<80x4xbf16>
    %c0_111 = arith.constant 0 : index
    %c0_112 = arith.constant 0 : index
    %133 = vector.load %arg4[%c0_111, %c0_112] : memref<4x8xbf16, #tpu.memory_space<vmem>>, vector<4x8xbf16>
    %cst_113 = arith.constant dense<0.000000e+00> : vector<80x8xf32>
    %134 = tpu.matmul %132, %133, %cst_113 {dimension_numbers = #tpu.dot_dimension_numbers<[1], [0], [0], [1], [0, 0, 1, 1], [], []>} : vector<80x4xbf16>, vector<4x8xbf16>, vector<80x8xf32> -> vector<80x8xf32>
    %c0_114 = arith.constant 0 : index
    %c0_115 = arith.constant 0 : index
    %135 = vector.load %arg6[%c0_114, %c0_115] : memref<1x8xf32, #tpu.memory_space<vmem>>, vector<1x8xf32>
    %136 = vector.broadcast %135 : vector<1x8xf32> to vector<80x8xf32>
    %137 = arith.addf %129, %136 : vector<80x8xf32>
    %138 = arith.addf %137, %134 : vector<80x8xf32>
    %cst_116 = arith.constant 0.000000e+00 : f32
    %139 = vector.broadcast %cst_116 : f32 to vector<80x8xf32>
    %140 = arith.maximumf %138, %139 : vector<80x8xf32>
    %c0_117 = arith.constant 0 : index
    %c0_118 = arith.constant 0 : index
    %c0_119 = arith.constant 0 : index
    %141 = vector.load %arg8[%c0_117, %c0_118, %c0_119] : memref<1x80x8xf32, #tpu.memory_space<vmem>>, vector<1x80x8xf32>
    %142 = vector.shape_cast %141 : vector<1x80x8xf32> to vector<80x8xf32>
    %143 = vector.shape_cast %140 : vector<80x8xf32> to vector<1x80x8xf32>
    tpu.vector_store %arg8[%c0_117, %c0_118, %c0_119], %143 {strides = array<i32>} : memref<1x80x8xf32, #tpu.memory_space<vmem>>, vector<1x80x8xf32>,
    return
  }
  func.func @transform_0(%arg0: i32) -> (i32, i32, i32) {
    %c0_i32 = arith.constant 0 : i32
    %c0_i32_0 = arith.constant 0 : i32
    %c0_i32_1 = arith.constant 0 : i32
    return %arg0, %c0_i32, %c0_i32_0 : i32, i32, i32
  }
  func.func @transform_1(%arg0: i32) -> (i32, i32, i32) {
    %c0_i32 = arith.constant 0 : i32
    %c0_i32_0 = arith.constant 0 : i32
    %c0_i32_1 = arith.constant 0 : i32
    %c0_i32_2 = arith.constant 0 : i32
    return %c0_i32, %c0_i32_0, %c0_i32_1 : i32, i32, i32
  }
  func.func @transform_2(%arg0: i32) -> (i32, i32, i32) {
    %c0_i32 = arith.constant 0 : i32
    %c0_i32_0 = arith.constant 0 : i32
    %c0_i32_1 = arith.constant 0 : i32
    %c0_i32_2 = arith.constant 0 : i32
    return %c0_i32, %c0_i32_0, %c0_i32_1 : i32, i32, i32
  }
  func.func @transform_3(%arg0: i32) -> (i32, i32) {
    %c0_i32 = arith.constant 0 : i32
    %c0_i32_0 = arith.constant 0 : i32
    %c0_i32_1 = arith.constant 0 : i32
    return %c0_i32, %c0_i32_0 : i32, i32
  }
  func.func @transform_4(%arg0: i32) -> (i32, i32) {
    %c0_i32 = arith.constant 0 : i32
    %c0_i32_0 = arith.constant 0 : i32
    %c0_i32_1 = arith.constant 0 : i32
    return %c0_i32, %c0_i32_0 : i32, i32
  }
  func.func @transform_5(%arg0: i32) -> (i32, i32) {
    %c0_i32 = arith.constant 0 : i32
    %c0_i32_0 = arith.constant 0 : i32
    %c0_i32_1 = arith.constant 0 : i32
    return %c0_i32, %c0_i32_0 : i32, i32
  }
  func.func @transform_6(%arg0: i32) -> (i32, i32) {
    %c0_i32 = arith.constant 0 : i32
    %c0_i32_0 = arith.constant 0 : i32
    %c0_i32_1 = arith.constant 0 : i32
    return %c0_i32, %c0_i32_0 : i32, i32
  }
  func.func @transform_7(%arg0: i32) -> (i32, i32, i32) {
    %c0_i32 = arith.constant 0 : i32
    %c0_i32_0 = arith.constant 0 : i32
    %c0_i32_1 = arith.constant 0 : i32
    return %arg0, %c0_i32, %c0_i32_0 : i32, i32, i32
  }
}

</mosaic_0001>

<llo_original>
// kernel: residual_block_forward.1
$region0: #{residual_block_forward.1}
  #allocation0 [shape = 'u32[]', space=smem, size = 0x4, offset = 0x4, fixed_abs, tag = 'smem constant byte address 0x4 - core index']
  #allocation1 [shape = 'u32[144,128]{1,0:T(1,128)}', space=vmem, size = 0x12000, scoped, tag = 'internal scratch']
  #allocation2 [shape = 'f32[108,8]{1,0:T(8,128)}', space=vmem, size = 0xe000, scoped, tag = 'scratch operand']
  %s0 = inlined_call_operand.vmem [shape: f32[2,392,4], index: 0, kind: input, shape index: {}]
  %s1 = inlined_call_operand.vmem [shape: bf16[9,4,8], index: 1, kind: input, shape index: {}]
  %s2 = inlined_call_operand.vmem [shape: bf16[9,8,8], index: 2, kind: input, shape index: {}]
  %s3 = inlined_call_operand.vmem [shape: bf16[4,8], index: 3, kind: input, shape index: {}]
  %s4 = inlined_call_operand.vmem [shape: f32[1,8], index: 4, kind: input, shape index: {}]
  %s5 = inlined_call_operand.vmem [shape: f32[1,8], index: 5, kind: input, shape index: {}]
  %s6 = inlined_call_operand.vmem [shape: f32[80,1], index: 6, kind: input, shape index: {}]
  %s7 = inlined_call_operand.vmem [shape: f32[2,80,8], index: 7, kind: output, shape index: {}]
  %s8 = sld [smem:[#allocation0]]
  $region61: #{residual_block_forward.1} parent=0
    _
  %s10 = ssub.s32 1, %s8
  %s11 = scalar_select 0, %s10, %s8
  loop: start=0, step=1, limit=4
  $region2: #{residual_block_forward.1} parent=0 // loop_pre_header
    _
  $region3: #{residual_block_forward.1} parent=0 // loop_header
    %s13 = sphi 0, %s17
    %p14 = scmp.ge.s32.totalorder %s13, 4
    %s23 = sphi 0, %s25
    %s26 = sphi 0, %s23
    %s27 = sphi 0, %s26
    %s43 = sphi 0, %s27
    %s47 = sphi 0, %s47
    %s49 = sphi 0, %s47
    %s50 = sphi 0, %s49
    %s64 = sphi 0, %s50
    %s68 = sphi 0, %s68
    %s70 = sphi 0, %s68
    %s71 = sphi 0, %s70
    %s85 = sphi 0, %s71
    %s89 = sphi 0, %s89
    %s91 = sphi 0, %s89
    %s92 = sphi 0, %s91
    %s106 = sphi 0, %s92
    %s110 = sphi 0, %s110
    %s112 = sphi 0, %s110
    %s113 = sphi 0, %s112
    %s127 = sphi 0, %s113
    %s131 = sphi 0, %s131
    %s133 = sphi 0, %s131
    %s134 = sphi 0, %s133
    %s148 = sphi 0, %s134
    %s152 = sphi 0, %s152
    %s154 = sphi 0, %s152
    %s155 = sphi 0, %s154
    %s169 = sphi 0, %s155
    %s175 = sphi 0, %s177
    %s178 = sphi 0, %s175
    %s179 = sphi 0, %s178
    %s195 = sphi 0, %s179
  $region4: #{residual_block_forward.1} parent=0 // loop_header_branch
    %16 = sbr.rel (%p14) target = $region8
  $region5: #{residual_block_forward.1} parent=0 // loop_body
    %s18 = ssub.s32 %s13, 1
    %s19 = ssub.s32 %s13, 2
    %s20 = sadd.s32 %s13, 1
    %s21 = ssub.s32 %s13, %s20
    %p22 = scmp.eq.s32.totalorder %s21, 0
    %s24 = sadd.s32 %s23, 1
    %s25 = scalar_select %p22, %s23, %s24
    %p28 = pneg %p22
    %p29 = scmp.eq.s32.totalorder %s13, 1
    %p30 = por %p28, %p29
    %p31 = scmp.ne.s32.totalorder %s23, %s26
    %p32 = scmp.eq.s32.totalorder %s13, 0
    %p33 = por %p31, %p32
    %p34 = scmp.ne.s32.totalorder %s23, %s26
    %p35 = scmp.eq.s32.totalorder %s18, 1
    %p36 = por %p34, %p35
    %p37 = scmp.ne.s32.totalorder %s26, %s27
    %p38 = scmp.eq.s32.totalorder %s18, 0
    %p39 = por %p37, %p38
    %p40 = scmp.ne.s32.totalorder %s26, %s27
    %p41 = scmp.eq.s32.totalorder %s19, 1
    %p42 = por %p40, %p41
    %p44 = scmp.ne.s32.totalorder %s27, %s43
    %p45 = scmp.eq.s32.totalorder %s19, 0
    %p46 = por %p44, %p45
    %s48 = sadd.s32 %s47, 1
    %p51 = scmp.eq.s32.totalorder %s13, 1
    %p52 = scmp.ne.s32.totalorder %s47, %s49
    %p53 = scmp.eq.s32.totalorder %s13, 0
    %p54 = por %p52, %p53
    %p55 = scmp.ne.s32.totalorder %s47, %s49
    %p56 = scmp.eq.s32.totalorder %s18, 1
    %p57 = por %p55, %p56
    %p58 = scmp.ne.s32.totalorder %s49, %s50
    %p59 = scmp.eq.s32.totalorder %s18, 0
    %p60 = por %p58, %p59
    %p61 = scmp.ne.s32.totalorder %s49, %s50
    %p62 = scmp.eq.s32.totalorder %s19, 1
    %p63 = por %p61, %p62
    %p65 = scmp.ne.s32.totalorder %s50, %s64
    %p66 = scmp.eq.s32.totalorder %s19, 0
    %p67 = por %p65, %p66
    %s69 = sadd.s32 %s68, 1
    %p72 = scmp.eq.s32.totalorder %s13, 1
    %p73 = scmp.ne.s32.totalorder %s68, %s70
    %p74 = scmp.eq.s32.totalorder %s13, 0
    %p75 = por %p73, %p74
    %p76 = scmp.ne.s32.totalorder %s68, %s70
    %p77 = scmp.eq.s32.totalorder %s18, 1
    %p78 = por %p76, %p77
    %p79 = scmp.ne.s32.totalorder %s70, %s71
    %p80 = scmp.eq.s32.totalorder %s18, 0
    %p81 = por %p79, %p80
    %p82 = scmp.ne.s32.totalorder %s70, %s71
    %p83 = scmp.eq.s32.totalorder %s19, 1
    %p84 = por %p82, %p83
    %p86 = scmp.ne.s32.totalorder %s71, %s85
    %p87 = scmp.eq.s32.totalorder %s19, 0
    %p88 = por %p86, %p87
    %s90 = sadd.s32 %s89, 1
    %p93 = scmp.eq.s32.totalorder %s13, 1
    %p94 = scmp.ne.s32.totalorder %s89, %s91
    %p95 = scmp.eq.s32.totalorder %s13, 0
    %p96 = por %p94, %p95
    %p97 = scmp.ne.s32.totalorder %s89, %s91
    %p98 = scmp.eq.s32.totalorder %s18, 1
    %p99 = por %p97, %p98
    %p100 = scmp.ne.s32.totalorder %s91, %s92
    %p101 = scmp.eq.s32.totalorder %s18, 0
    %p102 = por %p100, %p101
    %p103 = scmp.ne.s32.totalorder %s91, %s92
    %p104 = scmp.eq.s32.totalorder %s19, 1
    %p105 = por %p103, %p104
    %p107 = scmp.ne.s32.totalorder %s92, %s106
    %p108 = scmp.eq.s32.totalorder %s19, 0
    %p109 = por %p107, %p108
    %s111 = sadd.s32 %s110, 1
    %p114 = scmp.eq.s32.totalorder %s13, 1
    %p115 = scmp.ne.s32.totalorder %s110, %s112
    %p116 = scmp.eq.s32.totalorder %s13, 0
    %p117 = por %p115, %p116
    %p118 = scmp.ne.s32.totalorder %s110, %s112
    %p119 = scmp.eq.s32.totalorder %s18, 1
    %p120 = por %p118, %p119
    %p121 = scmp.ne.s32.totalorder %s112, %s113
    %p122 = scmp.eq.s32.totalorder %s18, 0
    %p123 = por %p121, %p122
    %p124 = scmp.ne.s32.totalorder %s112, %s113
    %p125 = scmp.eq.s32.totalorder %s19, 1
    %p126 = por %p124, %p125
    %p128 = scmp.ne.s32.totalorder %s113, %s127
    %p129 = scmp.eq.s32.totalorder %s19, 0
    %p130 = por %p128, %p129
    %s132 = sadd.s32 %s131, 1
    %p135 = scmp.eq.s32.totalorder %s13, 1
    %p136 = scmp.ne.s32.totalorder %s131, %s133
    %p137 = scmp.eq.s32.totalorder %s13, 0
    %p138 = por %p136, %p137
    %p139 = scmp.ne.s32.totalorder %s131, %s133
    %p140 = scmp.eq.s32.totalorder %s18, 1
    %p141 = por %p139, %p140
    %p142 = scmp.ne.s32.totalorder %s133, %s134
    %p143 = scmp.eq.s32.totalorder %s18, 0
    %p144 = por %p142, %p143
    %p145 = scmp.ne.s32.totalorder %s133, %s134
    %p146 = scmp.eq.s32.totalorder %s19, 1
    %p147 = por %p145, %p146
    %p149 = scmp.ne.s32.totalorder %s134, %s148
    %p150 = scmp.eq.s32.totalorder %s19, 0
    %p151 = por %p149, %p150
    %s153 = sadd.s32 %s152, 1
    %p156 = scmp.eq.s32.totalorder %s13, 1
    %p157 = scmp.ne.s32.totalorder %s152, %s154
    %p158 = scmp.eq.s32.totalorder %s13, 0
    %p159 = por %p157, %p158
    %p160 = scmp.ne.s32.totalorder %s152, %s154
    %p161 = scmp.eq.s32.totalorder %s18, 1
    %p162 = por %p160, %p161
    %p163 = scmp.ne.s32.totalorder %s154, %s155
    %p164 = scmp.eq.s32.totalorder %s18, 0
    %p165 = por %p163, %p164
    %p166 = scmp.ne.s32.totalorder %s154, %s155
    %p167 = scmp.eq.s32.totalorder %s19, 1
    %p168 = por %p166, %p167
    %p170 = scmp.ne.s32.totalorder %s155, %s169
    %p171 = scmp.eq.s32.totalorder %s19, 0
    %p172 = por %p170, %p171
    %s173 = ssub.s32 %s13, %s20
    %p174 = scmp.eq.s32.totalorder %s173, 0
    %s176 = sadd.s32 %s175, 1
    %s177 = scalar_select %p174, %s175, %s176
    %p180 = pneg %p174
    %p181 = scmp.eq.s32.totalorder %s13, 1
    %p182 = por %p180, %p181
    %p183 = scmp.ne.s32.totalorder %s175, %s178
    %p184 = scmp.eq.s32.totalorder %s13, 0
    %p185 = por %p183, %p184
    %p186 = scmp.ne.s32.totalorder %s175, %s178
    %p187 = scmp.eq.s32.totalorder %s18, 1
    %p188 = por %p186, %p187
    %p189 = scmp.ne.s32.totalorder %s178, %s179
    %p190 = scmp.eq.s32.totalorder %s18, 0
    %p191 = por %p189, %p190
    %p192 = scmp.ne.s32.totalorder %s178, %s179
    %p193 = scmp.eq.s32.totalorder %s19, 1
    %p194 = por %p192, %p193
    %p196 = scmp.ne.s32.totalorder %s179, %s195
    %p197 = scmp.eq.s32.totalorder %s19, 0
    %p198 = por %p196, %p197
    %p199 = scmp.le.s32.totalorder 1, %s13
    %p200 = scmp.lt.s32.totalorder %s13, 3
    %p201 = pnand %p199, %p200
    %p202 = pneg %p201
    // Predicated region
    $region9: #{residual_block_forward.1} parent=5 // pred_check
      _
    $region10: #{residual_block_forward.1} parent=5 // pred_check_branch
      %204 = sbr.rel (%p201) target = $region12
    $region11: #{residual_block_forward.1} parent=5 // pred_region
      %s205 = ssub.s32 %s13, 1
      // Predicated region
      $region13: #{residual_block_forward.1} parent=11 // pred_check
        %p206 = pneg %p60
      $region14: #{residual_block_forward.1} parent=11 // pred_check_branch
        %208 = sbr.rel (%p206) target = $region16
      $region15: #{residual_block_forward.1} parent=11 // pred_region
        _
      $region16: #{residual_block_forward.1} parent=11 // pred_fallthru
        _
      // Predicated region
      $region17: #{residual_block_forward.1} parent=11 // pred_check
        %p209 = pneg %p81
      $region18: #{residual_block_forward.1} parent=11 // pred_check_branch
        %211 = sbr.rel (%p209) target = $region20
      $region19: #{residual_block_forward.1} parent=11 // pred_region
        _
      $region20: #{residual_block_forward.1} parent=11 // pred_fallthru
        _
      // Predicated region
      $region21: #{residual_block_forward.1} parent=11 // pred_check
        %p212 = pneg %p102
      $region22: #{residual_block_forward.1} parent=11 // pred_check_branch
        %214 = sbr.rel (%p212) target = $region24
      $region23: #{residual_block_forward.1} parent=11 // pred_region
        _
      $region24: #{residual_block_forward.1} parent=11 // pred_fallthru
        _
      // Predicated region
      $region25: #{residual_block_forward.1} parent=11 // pred_check
        %p215 = pneg %p123
      $region26: #{residual_block_forward.1} parent=11 // pred_check_branch
        %217 = sbr.rel (%p215) target = $region28
      $region27: #{residual_block_forward.1} parent=11 // pred_region
        _
      $region28: #{residual_block_forward.1} parent=11 // pred_fallthru
        _
      // Predicated region
      $region29: #{residual_block_forward.1} parent=11 // pred_check
        %p218 = pneg %p144
      $region30: #{residual_block_forward.1} parent=11 // pred_check_branch
        %220 = sbr.rel (%p218) target = $region32
      $region31: #{residual_block_forward.1} parent=11 // pred_region
        _
      $region32: #{residual_block_forward.1} parent=11 // pred_fallthru
        _
      // Predicated region
      $region33: #{residual_block_forward.1} parent=11 // pred_check
        %p221 = pneg %p165
      $region34: #{residual_block_forward.1} parent=11 // pred_check_branch
        %223 = sbr.rel (%p221) target = $region36
      $region35: #{residual_block_forward.1} parent=11 // pred_region
        _
      $region36: #{residual_block_forward.1} parent=11 // pred_fallthru
        _
    $region12: #{residual_block_forward.1} parent=5 // pred_fallthru
      _
    %p224 = scmp.lt.s32.totalorder %s13, 2
    // Predicated region
    $region37: #{residual_block_forward.1} parent=5 // pred_check
      %p225 = pneg %p224
    $region38: #{residual_block_forward.1} parent=5 // pred_check_branch
      %227 = sbr.rel (%p225) target = $region40
    $region39: #{residual_block_forward.1} parent=5 // pred_region
      // Predicated region
      $region41: #{residual_block_forward.1} parent=39 // pred_check
        %p228 = pneg %p33
      $region42: #{residual_block_forward.1} parent=39 // pred_check_branch
        %230 = sbr.rel (%p228) target = $region44
      $region43: #{residual_block_forward.1} parent=39 // pred_region
        %p231 = scmp.lt.s32.totalorder %s13, 1
        %s232 = scalar_select %p231, %s13, 1
        %s233 = smul.addr %s232, 49
        %s234 = smul.addr %s233, 8
        %s235 = scalar_lea.vmem %s0, %s234
      $region44: #{residual_block_forward.1} parent=39 // pred_fallthru
        _
    $region40: #{residual_block_forward.1} parent=5 // pred_fallthru
      _
    %p236 = scmp.le.s32.totalorder 1, %s13
    %p237 = scmp.lt.s32.totalorder %s13, 3
    %p238 = pnand %p236, %p237
    %p239 = pneg %p238
    // Predicated region
    $region45: #{residual_block_forward.1} parent=5 // pred_check
      _
    $region46: #{residual_block_forward.1} parent=5 // pred_check_branch
      %241 = sbr.rel (%p238) target = $region48
    $region47: #{residual_block_forward.1} parent=5 // pred_region
      %s242 = ssub.s32 %s13, 1
      %p243 = scmp.lt.s32.totalorder %s18, 1
      %s244 = scalar_select %p243, %s18, 1
      %s245 = smul.addr %s244, 49
      %s246 = smul.addr %s245, 8
      %s247 = scalar_lea.vmem %s0, %s246
      %p248 = pneg %p39
      %p249 = pneg %p36
      %p250 = pneg %p60
      %p251 = pneg %p57
      %p252 = pneg %p81
      %p253 = pneg %p78
      %p254 = pneg %p102
      %p255 = pneg %p99
      %p256 = pneg %p123
      %p257 = pneg %p120
      %p258 = pneg %p144
      %p259 = pneg %p141
      %p260 = pneg %p165
      %p261 = pneg %p162
      %p262 = pneg %p191
      %p263 = pneg %p188
      %p264 = scmp.lt.s32.totalorder %s18, 1
      %s265 = scalar_select %p264, %s18, 1
      %s266 = smul.addr %s265, 10
      %s267 = smul.addr %s266, 8
      %s268 = scalar_lea.vmem %s7, %s267
      %p269 = scmp.lt.s32.totalorder %s18, 1
      %s270 = scalar_select %p269, %s18, 1
      %s271 = smul.addr %s270, 49
      %s272 = smul.addr %s271, 8
      %s273 = scalar_lea.vmem %s0, %s272
      %p274 = scmp.lt.s32.totalorder %s18, 1
      %s275 = scalar_select %p274, %s18, 1
      %s276 = smul.addr %s275, 10
      %s277 = smul.addr %s276, 8
      %s278 = scalar_lea.vmem %s7, %s277
      %v280 = vld [vmem:[%s273] sm:$0xff]
      %v281 = vld [vmem:[%s273 + $0x8] sm:$0xff]
      %v282 = vld [vmem:[%s273 + $0x10] sm:$0xff]
      %v283 = vld [vmem:[%s273 + $0x18] sm:$0xff]
      %v284 = vld [vmem:[%s273 + $0x20] sm:$0xff]
      %v285 = vld [vmem:[%s273 + $0x28] sm:$0xff]
      %v286 = vld [vmem:[%s273 + $0x30] sm:$0xff]
      %v287 = vld [vmem:[%s273 + $0x38] sm:$0xff]
      %v288 = vld [vmem:[%s273 + $0x40] sm:$0xff]
      %v289 = vld [vmem:[%s273 + $0x48] sm:$0xff]
      %v290 = vpack.c.bf16 %v281, %v280
      %v291 = vpack.c.bf16 %v283, %v282
      %v292 = vpack.c.bf16 %v285, %v284
      %v293 = vpack.c.bf16 %v287, %v286
      %v294 = vpack.c.bf16 %v289, %v288
      %v295 = vld [vmem:[%s1] sm:$0x3]
      %v296 = vld [vmem:[%s273 + $0x62] sm:$0xff]
      %v297 = vld [vmem:[%s273 + $0x6a] sm:$0xff]
      %v298 = vld [vmem:[%s273 + $0x72] sm:$0xff]
      %v299 = vld [vmem:[%s273 + $0x7a] sm:$0xff]
      %v300 = vld [vmem:[%s273 + $0x82] sm:$0xff]
      %v301 = vld [vmem:[%s273 + $0x8a] sm:$0xff]
      %v302 = vld [vmem:[%s273 + $0x92] sm:$0xff]
      %v303 = vld [vmem:[%s273 + $0x9a] sm:$0xff]
      %v304 = vld [vmem:[%s273 + $0xa2] sm:$0xff]
      %v305 = vld [vmem:[%s273 + $0xaa] sm:$0xff]
      %v306 = vpack.c.bf16 %v297, %v296
      %v307 = vpack.c.bf16 %v299, %v298
      %v308 = vpack.c.bf16 %v301, %v300
      %v309 = vpack.c.bf16 %v303, %v302
      %v310 = vpack.c.bf16 %v305, %v304
      %s311 = scalar_lea.vmem %s1, 2
      %v312 = vld [vmem:[%s311] sm:$0x3]
      %vm313 = vcmask 31744
      %v315 = vsel %vm313, %v306, 0
      %v318 = vsel %vm313, %v307, 0
      %v321 = vsel %vm313, %v308, 0
      %v324 = vsel %vm313, %v309, 0
      %v327 = vsel %vm313, %v310, 0
      %vm329 = vcmask 1041408
      %v331 = vsel %vm329, %v312, 0
      %333 = vmatprep.subr.bf16.mxu0 0
      %334 = vmatpush1.bf16.msra.mxu0 %v331
      %335 = vmatprep.subr.bf16.mxu0 0
      %336 = vmatpush1.bf16.msra.mxu0 0
      %337 = vmatprep.subr.bf16.mxu0 0
      %338 = vmatpush1.bf16.msra.mxu0 0
      %339 = vmatprep.subr.bf16.mxu0 0
      %340 = vmatpush1.bf16.msra.mxu0 0
      %341 = vmatprep.subr.bf16.mxu0 0
      %342 = vmatpush1.bf16.msra.mxu0 0
      %343 = vmatprep.subr.bf16.mxu0 0
      %344 = vmatpush1.bf16.msra.mxu0 0
      %345 = vmatprep.subr.bf16.mxu0 0
      %346 = vmatpush1.bf16.msra.mxu0 0
      %347 = vmatprep.subr.bf16.mxu0 0
      %348 = vmatpush1.bf16.msra.mxu0 0
      %349 = vmatprep.subr.bf16.mxu0 0
      %350 = vmatpush1.bf16.msra.mxu0 0
      %351 = vmatprep.subr.bf16.mxu0 0
      %352 = vmatpush1.bf16.msra.mxu0 0
      %353 = vmatprep.subr.bf16.mxu0 0
      %354 = vmatpush1.bf16.msra.mxu0 0
      %355 = vmatprep.subr.bf16.mxu0 0
      %356 = vmatpush1.bf16.msra.mxu0 0
      %357 = vmatprep.subr.bf16.mxu0 0
      %358 = vmatpush1.bf16.msra.mxu0 0
      %359 = vmatprep.subr.bf16.mxu0 0
      %360 = vmatpush1.bf16.msra.mxu0 0
      %361 = vmatprep.subr.bf16.mxu0 0
      %362 = vmatpush1.bf16.msra.mxu0 0
      %363 = vmatprep.subr.bf16.mxu0 0
      %364 = vmatpush1.bf16.msra.mxu0 0
      %365 = vmatprep.mubr.bf16.mxu0 0
      %366 = vmatmul.mubr.bf16.gmra.mrb[0].mxu0 %v315
      %v367 = vpop.f32.mrb[0].mxu0
      %v368 = vadd.f32 0.0, %v367
      %v369 = vpop.f32.mrb[0].mxu0
      %v370 = vpop.f32.mrb[0].mxu0
      %v371 = vadd.f32 0.0, %v370
      %v372 = vpop.f32.mrb[0].mxu0
      %373 = vmatprep.mubr.bf16.mxu0 0
      %374 = vmatmul.mubr.bf16.gmra.mrb[0].mxu0 %v318
      %v375 = vpop.f32.mrb[0].mxu0
      %v376 = vadd.f32 0.0, %v375
      %v377 = vpop.f32.mrb[0].mxu0
      %v378 = vpop.f32.mrb[0].mxu0
      %v379 = vadd.f32 0.0, %v378
      %v380 = vpop.f32.mrb[0].mxu0
      %381 = vmatprep.mubr.bf16.mxu0 0
      %382 = vmatmul.mubr.bf16.gmra.mrb[0].mxu0 %v321
      %v383 = vpop.f32.mrb[0].mxu0
      %v384 = vadd.f32 0.0, %v383
      %v385 = vpop.f32.mrb[0].mxu0
      %v386 = vpop.f32.mrb[0].mxu0
      %v387 = vadd.f32 0.0, %v386
      %v388 = vpop.f32.mrb[0].mxu0
      %389 = vmatprep.mubr.bf16.mxu0 0
      %390 = vmatmul.mubr.bf16.gmra.mrb[0].mxu0 %v324
      %v391 = vpop.f32.mrb[0].mxu0
      %v392 = vadd.f32 0.0, %v391
      %v393 = vpop.f32.mrb[0].mxu0
      %v394 = vpop.f32.mrb[0].mxu0
      %v395 = vadd.f32 0.0, %v394
      %v396 = vpop.f32.mrb[0].mxu0
      %397 = vmatprep.mubr.bf16.mxu0 0
      %398 = vmatmul.mubr.bf16.gmra.mrb[0].mxu0 %v327
      %v399 = vpop.f32.mrb[0].mxu0
      %v400 = vadd.f32 0.0, %v399
      %v401 = vpop.f32.mrb[0].mxu0
      %v402 = vpop.f32.mrb[0].mxu0
      %v403 = vadd.f32 0.0, %v402
      %v404 = vpop.f32.mrb[0].mxu0
      %405 = vdwg.mxu0
      %v407 = vsel %vm313, %v290, 0
      %v410 = vsel %vm313, %v291, 0
      %v413 = vsel %vm313, %v292, 0
      %v416 = vsel %vm313, %v293, 0
      %v419 = vsel %vm313, %v294, 0
      %v422 = vsel %vm329, %v295, 0
      %424 = vmatprep.subr.bf16.mxu0 0
      %425 = vmatpush1.bf16.msra.mxu0 %v422
      %426 = vmatprep.subr.bf16.mxu0 0
      %427 = vmatpush1.bf16.msra.mxu0 0
      %428 = vmatprep.subr.bf16.mxu0 0
      %429 = vmatpush1.bf16.msra.mxu0 0
      %430 = vmatprep.subr.bf16.mxu0 0
      %431 = vmatpush1.bf16.msra.mxu0 0
      %432 = vmatprep.subr.bf16.mxu0 0
      %433 = vmatpush1.bf16.msra.mxu0 0
      %434 = vmatprep.subr.bf16.mxu0 0
      %435 = vmatpush1.bf16.msra.mxu0 0
      %436 = vmatprep.subr.bf16.mxu0 0
      %437 = vmatpush1.bf16.msra.mxu0 0
      %438 = vmatprep.subr.bf16.mxu0 0
      %439 = vmatpush1.bf16.msra.mxu0 0
      %440 = vmatprep.subr.bf16.mxu0 0
      %441 = vmatpush1.bf16.msra.mxu0 0
      %442 = vmatprep.subr.bf16.mxu0 0
      %443 = vmatpush1.bf16.msra.mxu0 0
      %444 = vmatprep.subr.bf16.mxu0 0
      %445 = vmatpush1.bf16.msra.mxu0 0
      %446 = vmatprep.subr.bf16.mxu0 0
      %447 = vmatpush1.bf16.msra.mxu0 0
      %448 = vmatprep.subr.bf16.mxu0 0
      %449 = vmatpush1.bf16.msra.mxu0 0
      %450 = vmatprep.subr.bf16.mxu0 0
      %451 = vmatpush1.bf16.msra.mxu0 0
      %452 = vmatprep.subr.bf16.mxu0 0
      %453 = vmatpush1.bf16.msra.mxu0 0
      %454 = vmatprep.subr.bf16.mxu0 0
      %455 = vmatpush1.bf16.msra.mxu0 0
      %456 = vmatprep.mubr.bf16.mxu0 0
      %457 = vmatmul.mubr.bf16.gmra.mrb[0].mxu0 %v407
      %v458 = vpop.f32.mrb[0].mxu0
      %v459 = vadd.f32 %v368, %v458
      %v460 = vpop.f32.mrb[0].mxu0
      %v461 = vpop.f32.mrb[0].mxu0
      %v462 = vadd.f32 %v371, %v461
      %v463 = vpop.f32.mrb[0].mxu0
      %464 = vmatprep.mubr.bf16.mxu0 0
      %465 = vmatmul.mubr.bf16.gmra.mrb[0].mxu0 %v410
      %v466 = vpop.f32.mrb[0].mxu0
      %v467 = vadd.f32 %v376, %v466
      %v468 = vpop.f32.mrb[0].mxu0
      %v469 = vpop.f32.mrb[0].mxu0
      %v470 = vadd.f32 %v379, %v469
      %v471 = vpop.f32.mrb[0].mxu0
      %472 = vmatprep.mubr.bf16.mxu0 0
      %473 = vmatmul.mubr.bf16.gmra.mrb[0].mxu0 %v413
      %v474 = vpop.f32.mrb[0].mxu0
      %v475 = vadd.f32 %v384, %v474
      %v476 = vpop.f32.mrb[0].mxu0
      %v477 = vpop.f32.mrb[0].mxu0
      %v478 = vadd.f32 %v387, %v477
      %v479 = vpop.f32.mrb[0].mxu0
      %480 = vmatprep.mubr.bf16.mxu0 0
      %481 = vmatmul.mubr.bf16.gmra.mrb[0].mxu0 %v416
      %v482 = vpop.f32.mrb[0].mxu0
      %v483 = vadd.f32 %v392, %v482
      %v484 = vpop.f32.mrb[0].mxu0
      %v485 = vpop.f32.mrb[0].mxu0
      %v486 = vadd.f32 %v395, %v485
      %v487 = vpop.f32.mrb[0].mxu0
      %488 = vmatprep.mubr.bf16.mxu0 0
      %489 = vmatmul.mubr.bf16.gmra.mrb[0].mxu0 %v419
      %v490 = vpop.f32.mrb[0].mxu0
      %v491 = vadd.f32 %v400, %v490
      %v492 = vpop.f32.mrb[0].mxu0
      %v493 = vpop.f32.mrb[0].mxu0
      %v494 = vadd.f32 %v403, %v493
      %v495 = vpop.f32.mrb[0].mxu0
      %496 = vdwg.mxu0
      %v497 = vld [vmem:[%s273 + $0x1] sm:$0xff]
      %v498 = vld [vmem:[%s273 + $0x9] sm:$0xff]
      %v499 = vld [vmem:[%s273 + $0x11] sm:$0xff]
      %v500 = vld [vmem:[%s273 + $0x19] sm:$0xff]
      %v501 = vld [vmem:[%s273 + $0x21] sm:$0xff]
      %v502 = vld [vmem:[%s273 + $0x29] sm:$0xff]
      %v503 = vld [vmem:[%s273 + $0x31] sm:$0xff]
      %v504 = vld [vmem:[%s273 + $0x39] sm:$0xff]
      %v505 = vld [vmem:[%s273 + $0x41] sm:$0xff]
      %v506 = vld [vmem:[%s273 + $0x49] sm:$0xff]
      %v507 = vpack.c.bf16 %v498, %v497
      %v508 = vpack.c.bf16 %v500, %v499
      %v509 = vpack.c.bf16 %v502, %v501
      %v510 = vpack.c.bf16 %v504, %v503
      %v511 = vpack.c.bf16 %v506, %v505
      %s512 = scalar_lea.vmem %s1, 4
      %v513 = vld [vmem:[%s512] sm:$0x3]
      %v515 = vsel %vm313, %v507, 0
      %v518 = vsel %vm313, %v508, 0
      %v521 = vsel %vm313, %v509, 0
      %v524 = vsel %vm313, %v510, 0
      %v527 = vsel %vm313, %v511, 0
      %v530 = vsel %vm329, %v513, 0
      %532 = vmatprep.subr.bf16.mxu0 0
      %533 = vmatpush1.bf16.msra.mxu0 %v530
      %534 = vmatprep.subr.bf16.mxu0 0
      %535 = vmatpush1.bf16.msra.mxu0 0
      %536 = vmatprep.subr.bf16.mxu0 0
      %537 = vmatpush1.bf16.msra.mxu0 0
      %538 = vmatprep.subr.bf16.mxu0 0
      %539 = vmatpush1.bf16.msra.mxu0 0
      %540 = vmatprep.subr.bf16.mxu0 0
      %541 = vmatpush1.bf16.msra.mxu0 0
      %542 = vmatprep.subr.bf16.mxu0 0
      %543 = vmatpush1.bf16.msra.mxu0 0
      %544 = vmatprep.subr.bf16.mxu0 0
      %545 = vmatpush1.bf16.msra.mxu0 0
      %546 = vmatprep.subr.bf16.mxu0 0
      %547 = vmatpush1.bf16.msra.mxu0 0
      %548 = vmatprep.subr.bf16.mxu0 0
      %549 = vmatpush1.bf16.msra.mxu0 0
      %550 = vmatprep.subr.bf16.mxu0 0
      %551 = vmatpush1.bf16.msra.mxu0 0
      %552 = vmatprep.subr.bf16.mxu0 0
      %553 = vmatpush1.bf16.msra.mxu0 0
      %554 = vmatprep.subr.bf16.mxu0 0
      %555 = vmatpush1.bf16.msra.mxu0 0
      %556 = vmatprep.subr.bf16.mxu0 0
      %557 = vmatpush1.bf16.msra.mxu0 0
      %558 = vmatprep.subr.bf16.mxu0 0
      %559 = vmatpush1.bf16.msra.mxu0 0
      %560 = vmatprep.subr.bf16.mxu0 0
      %561 = vmatpush1.bf16.msra.mxu0 0
      %562 = vmatprep.subr.bf16.mxu0 0
      %563 = vmatpush1.bf16.msra.mxu0 0
      %564 = vmatprep.mubr.bf16.mxu0 0
      %565 = vmatmul.mubr.bf16.gmra.mrb[0].mxu0 %v515
      %v566 = vpop.f32.mrb[0].mxu0
      %v567 = vadd.f32 0.0, %v566
      %v568 = vpop.f32.mrb[0].mxu0
      %v569 = vpop.f32.mrb[0].mxu0
      %v570 = vadd.f32 0.0, %v569
      %v571 = vpop.f32.mrb[0].mxu0
      %572 = vmatprep.mubr.bf16.mxu0 0
      %573 = vmatmul.mubr.bf16.gmra.mrb[0].mxu0 %v518
      %v574 = vpop.f32.mrb[0].mxu0
      %v575 = vadd.f32 0.0, %v574
      %v576 = vpop.f32.mrb[0].mxu0
      %v577 = vpop.f32.mrb[0].mxu0
      %v578 = vadd.f32 0.0, %v577
      %v579 = vpop.f32.mrb[0].mxu0
      %580 = vmatprep.mubr.bf16.mxu0 0
      %581 = vmatmul.mubr.bf16.gmra.mrb[0].mxu0 %v521
      %v582 = vpop.f32.mrb[0].mxu0
      %v583 = vadd.f32 0.0, %v582
      %v584 = vpop.f32.mrb[0].mxu0
      %v585 = vpop.f32.mrb[0].mxu0
      %v586 = vadd.f32 0.0, %v585
      %v587 = vpop.f32.mrb[0].mxu0
      %588 = vmatprep.mubr.bf16.mxu0 0
      %589 = vmatmul.mubr.bf16.gmra.mrb[0].mxu0 %v524
      %v590 = vpop.f32.mrb[0].mxu0
      %v591 = vadd.f32 0.0, %v590
      %v592 = vpop.f32.mrb[0].mxu0
      %v593 = vpop.f32.mrb[0].mxu0
      %v594 = vadd.f32 0.0, %v593
      %v595 = vpop.f32.mrb[0].mxu0
      %596 = vmatprep.mubr.bf16.mxu0 0
      %597 = vmatmul.mubr.bf16.gmra.mrb[0].mxu0 %v527
      %v598 = vpop.f32.mrb[0].mxu0
      %v599 = vadd.f32 0.0, %v598
      %v600 = vpop.f32.mrb[0].mxu0
      %v601 = vpop.f32.mrb[0].mxu0
      %v602 = vadd.f32 0.0, %v601
      %v603 = vpop.f32.mrb[0].mxu0
      %604 = vdwg.mxu0
      %v605 = vadd.f32 %v459, %v567
      %v606 = vadd.f32 %v462, %v570
      %v607 = vadd.f32 %v467, %v575
      %v608 = vadd.f32 %v470, %v578
      %v609 = vadd.f32 %v475, %v583
      %v610 = vadd.f32 %v478, %v586
      %v611 = vadd.f32 %v483, %v591
      %v612 = vadd.f32 %v486, %v594
      %v613 = vadd.f32 %v491, %v599
      %v614 = vadd.f32 %v494, %v602
      %v615 = vld [vmem:[%s273 + $0xc4] sm:$0xff]
      %v616 = vld [vmem:[%s273 + $0xcc] sm:$0xff]
      %v617 = vld [vmem:[%s273 + $0xd4] sm:$0xff]
      %v618 = vld [vmem:[%s273 + $0xdc] sm:$0xff]
      %v619 = vld [vmem:[%s273 + $0xe4] sm:$0xff]
      %v620 = vld [vmem:[%s273 + $0xec] sm:$0xff]
      %v621 = vld [vmem:[%s273 + $0xf4] sm:$0xff]
      %v622 = vld [vmem:[%s273 + $0xfc] sm:$0xff]
      %v623 = vld [vmem:[%s273 + $0x104] sm:$0xff]
      %v624 = vld [vmem:[%s273 + $0x10c] sm:$0xff]
      %v625 = vpack.c.bf16 %v616, %v615
      %v626 = vpack.c.bf16 %v618, %v617
      %v627 = vpack.c.bf16 %v620, %v619
      %v628 = vpack.c.bf16 %v622, %v621
      %v629 = vpack.c.bf16 %v624, %v623
      %s630 = scalar_lea.vmem %s1, 6
      %v631 = vld [vmem:[%s630] sm:$0x3]
      %v633 = vsel %vm313, %v625, 0
      %v636 = vsel %vm313, %v626, 0
      %v639 = vsel %vm313, %v627, 0
      %v642 = vsel %vm313, %v628, 0
      %v645 = vsel %vm313, %v629, 0
      %v648 = vsel %vm329, %v631, 0
      %650 = vmatprep.subr.bf16.mxu0 0
      %651 = vmatpush1.bf16.msra.mxu0 %v648
      %652 = vmatprep.subr.bf16.mxu0 0
      %653 = vmatpush1.bf16.msra.mxu0 0
      %654 = vmatprep.subr.bf16.mxu0 0
      %655 = vmatpush1.bf16.msra.mxu0 0
      %656 = vmatprep.subr.bf16.mxu0 0
      %657 = vmatpush1.bf16.msra.mxu0 0
      %658 = vmatprep.subr.bf16.mxu0 0
      %659 = vmatpush1.bf16.msra.mxu0 0
      %660 = vmatprep.subr.bf16.mxu0 0
      %661 = vmatpush1.bf16.msra.mxu0 0
      %662 = vmatprep.subr.bf16.mxu0 0
      %663 = vmatpush1.bf16.msra.mxu0 0
      %664 = vmatprep.subr.bf16.mxu0 0
      %665 = vmatpush1.bf16.msra.mxu0 0
      %666 = vmatprep.subr.bf16.mxu0 0
      %667 = vmatpush1.bf16.msra.mxu0 0
      %668 = vmatprep.subr.bf16.mxu0 0
      %669 = vmatpush1.bf16.msra.mxu0 0
      %670 = vmatprep.subr.bf16.mxu0 0
      %671 = vmatpush1.bf16.msra.mxu0 0
      %672 = vmatprep.subr.bf16.mxu0 0
      %673 = vmatpush1.bf16.msra.mxu0 0
      %674 = vmatprep.subr.bf16.mxu0 0
      %675 = vmatpush1.bf16.msra.mxu0 0
      %676 = vmatprep.subr.bf16.mxu0 0
      %677 = vmatpush1.bf16.msra.mxu0 0
      %678 = vmatprep.subr.bf16.mxu0 0
      %679 = vmatpush1.bf16.msra.mxu0 0
      %680 = vmatprep.subr.bf16.mxu0 0
      %681 = vmatpush1.bf16.msra.mxu0 0
      %682 = vmatprep.mubr.bf16.mxu0 0
      %683 = vmatmul.mubr.bf16.gmra.mrb[0].mxu0 %v633
      %v684 = vpop.f32.mrb[0].mxu0
      %v685 = vadd.f32 0.0, %v684
      %v686 = vpop.f32.mrb[0].mxu0
      %v687 = vpop.f32.mrb[0].mxu0
      %v688 = vadd.f32 0.0, %v687
      %v689 = vpop.f32.mrb[0].mxu0
      %690 = vmatprep.mubr.bf16.mxu0 0
      %691 = vmatmul.mubr.bf16.gmra.mrb[0].mxu0 %v636
      %v692 = vpop.f32.mrb[0].mxu0
      %v693 = vadd.f32 0.0, %v692
      %v694 = vpop.f32.mrb[0].mxu0
      %v695 = vpop.f32.mrb[0].mxu0
      %v696 = vadd.f32 0.0, %v695
      %v697 = vpop.f32.mrb[0].mxu0
      %698 = vmatprep.mubr.bf16.mxu0 0
      %699 = vmatmul.mubr.bf16.gmra.mrb[0].mxu0 %v639
      %v700 = vpop.f32.mrb[0].mxu0
      %v701 = vadd.f32 0.0, %v700
      %v702 = vpop.f32.mrb[0].mxu0
      %v703 = vpop.f32.mrb[0].mxu0
      %v704 = vadd.f32 0.0, %v703
      %v705 = vpop.f32.mrb[0].mxu0
      %706 = vmatprep.mubr.bf16.mxu0 0
      %707 = vmatmul.mubr.bf16.gmra.mrb[0].mxu0 %v642
      %v708 = vpop.f32.mrb[0].mxu0
      %v709 = vadd.f32 0.0, %v708
      %v710 = vpop.f32.mrb[0].mxu0
      %v711 = vpop.f32.mrb[0].mxu0
      %v712 = vadd.f32 0.0, %v711
      %v713 = vpop.f32.mrb[0].mxu0
      %714 = vmatprep.mubr.bf16.mxu0 0
      %715 = vmatmul.mubr.bf16.gmra.mrb[0].mxu0 %v645
      %v716 = vpop.f32.mrb[0].mxu0
      %v717 = vadd.f32 0.0, %v716
      %v718 = vpop.f32.mrb[0].mxu0
      %v719 = vpop.f32.mrb[0].mxu0
      %v720 = vadd.f32 0.0, %v719
      %v721 = vpop.f32.mrb[0].mxu0
      %722 = vdwg.mxu0
      %v723 = vadd.f32 %v605, %v685
      %v724 = vadd.f32 %v606, %v688
      %v725 = vadd.f32 %v607, %v693
      %v726 = vadd.f32 %v608, %v696
      %v727 = vadd.f32 %v609, %v701
      %v728 = vadd.f32 %v610, %v704
      %v729 = vadd.f32 %v611, %v709
      %v730 = vadd.f32 %v612, %v712
      %v731 = vadd.f32 %v613, %v717
      %v732 = vadd.f32 %v614, %v720
      %v733 = vld [vmem:[%s273 + $0x126] sm:$0xff]
      %v734 = vld [vmem:[%s273 + $0x12e] sm:$0xff]
      %v735 = vld [vmem:[%s273 + $0x136] sm:$0xff]
      %v736 = vld [vmem:[%s273 + $0x13e] sm:$0xff]
      %v737 = vld [vmem:[%s273 + $0x146] sm:$0xff]
      %v738 = vld [vmem:[%s273 + $0x14e] sm:$0xff]
      %v739 = vld [vmem:[%s273 + $0x156] sm:$0xff]
      %v740 = vld [vmem:[%s273 + $0x15e] sm:$0xff]
      %v741 = vld [vmem:[%s273 + $0x166] sm:$0xff]
      %v742 = vld [vmem:[%s273 + $0x16e] sm:$0xff]
      %v743 = vpack.c.bf16 %v734, %v733
      %v744 = vpack.c.bf16 %v736, %v735
      %v745 = vpack.c.bf16 %v738, %v737
      %v746 = vpack.c.bf16 %v740, %v739
      %v747 = vpack.c.bf16 %v742, %v741
      %s748 = scalar_lea.vmem %s1, 8
      %v749 = vld [vmem:[%s748] sm:$0x3]
      %v751 = vsel %vm313, %v743, 0
      %v754 = vsel %vm313, %v744, 0
      %v757 = vsel %vm313, %v745, 0
      %v760 = vsel %vm313, %v746, 0
      %v763 = vsel %vm313, %v747, 0
      %v766 = vsel %vm329, %v749, 0
      %768 = vmatprep.subr.bf16.mxu0 0
      %769 = vmatpush1.bf16.msra.mxu0 %v766
      %770 = vmatprep.subr.bf16.mxu0 0
      %771 = vmatpush1.bf16.msra.mxu0 0
      %772 = vmatprep.subr.bf16.mxu0 0
      %773 = vmatpush1.bf16.msra.mxu0 0
      %774 = vmatprep.subr.bf16.mxu0 0
      %775 = vmatpush1.bf16.msra.mxu0 0
      %776 = vmatprep.subr.bf16.mxu0 0
      %777 = vmatpush1.bf16.msra.mxu0 0
      %778 = vmatprep.subr.bf16.mxu0 0
      %779 = vmatpush1.bf16.msra.mxu0 0
      %780 = vmatprep.subr.bf16.mxu0 0
      %781 = vmatpush1.bf16.msra.mxu0 0
      %782 = vmatprep.subr.bf16.mxu0 0
      %783 = vmatpush1.bf16.msra.mxu0 0
      %784 = vmatprep.subr.bf16.mxu0 0
      %785 = vmatpush1.bf16.msra.mxu0 0
      %786 = vmatprep.subr.bf16.mxu0 0
      %787 = vmatpush1.bf16.msra.mxu0 0
      %788 = vmatprep.subr.bf16.mxu0 0
      %789 = vmatpush1.bf16.msra.mxu0 0
      %790 = vmatprep.subr.bf16.mxu0 0
      %791 = vmatpush1.bf16.msra.mxu0 0
      %792 = vmatprep.subr.bf16.mxu0 0
      %793 = vmatpush1.bf16.msra.mxu0 0
      %794 = vmatprep.subr.bf16.mxu0 0
      %795 = vmatpush1.bf16.msra.mxu0 0
      %796 = vmatprep.subr.bf16.mxu0 0
      %797 = vmatpush1.bf16.msra.mxu0 0
      %798 = vmatprep.subr.bf16.mxu0 0
      %799 = vmatpush1.bf16.msra.mxu0 0
      %800 = vmatprep.mubr.bf16.mxu0 0
      %801 = vmatmul.mubr.bf16.gmra.mrb[0].mxu0 %v751
      %v802 = vpop.f32.mrb[0].mxu0
      %v803 = vadd.f32 0.0, %v802
      %v804 = vpop.f32.mrb[0].mxu0
      %v805 = vpop.f32.mrb[0].mxu0
      %v806 = vadd.f32 0.0, %v805
      %v807 = vpop.f32.mrb[0].mxu0
      %808 = vmatprep.mubr.bf16.mxu0 0
      %809 = vmatmul.mubr.bf16.gmra.mrb[0].mxu0 %v754
      %v810 = vpop.f32.mrb[0].mxu0
      %v811 = vadd.f32 0.0, %v810
      %v812 = vpop.f32.mrb[0].mxu0
      %v813 = vpop.f32.mrb[0].mxu0
      %v814 = vadd.f32 0.0, %v813
      %v815 = vpop.f32.mrb[0].mxu0
      %816 = vmatprep.mubr.bf16.mxu0 0
      %817 = vmatmul.mubr.bf16.gmra.mrb[0].mxu0 %v757
      %v818 = vpop.f32.mrb[0].mxu0
      %v819 = vadd.f32 0.0, %v818
      %v820 = vpop.f32.mrb[0].mxu0
      %v821 = vpop.f32.mrb[0].mxu0
      %v822 = vadd.f32 0.0, %v821
      %v823 = vpop.f32.mrb[0].mxu0
      %824 = vmatprep.mubr.bf16.mxu0 0
      %825 = vmatmul.mubr.bf16.gmra.mrb[0].mxu0 %v760
      %v826 = vpop.f32.mrb[0].mxu0
      %v827 = vadd.f32 0.0, %v826
      %v828 = vpop.f32.mrb[0].mxu0
      %v829 = vpop.f32.mrb[0].mxu0
      %v830 = vadd.f32 0.0, %v829
      %v831 = vpop.f32.mrb[0].mxu0
      %832 = vmatprep.mubr.bf16.mxu0 0
      %833 = vmatmul.mubr.bf16.gmra.mrb[0].mxu0 %v763
      %v834 = vpop.f32.mrb[0].mxu0
      %v835 = vadd.f32 0.0, %v834
      %v836 = vpop.f32.mrb[0].mxu0
      %v837 = vpop.f32.mrb[0].mxu0
      %v838 = vadd.f32 0.0, %v837
      %v839 = vpop.f32.mrb[0].mxu0
      %840 = vdwg.mxu0
      %v841 = vadd.f32 %v723, %v803
      %v842 = vadd.f32 %v724, %v806
      %v843 = vadd.f32 %v725, %v811
      %v844 = vadd.f32 %v726, %v814
      %v845 = vadd.f32 %v727, %v819
      %v846 = vadd.f32 %v728, %v822
      %v847 = vadd.f32 %v729, %v827
      %v848 = vadd.f32 %v730, %v830
      %v849 = vadd.f32 %v731, %v835
      %v850 = vadd.f32 %v732, %v838
      %v851 = vld [vmem:[%s273 + $0xc5] sm:$0xff]
      %v852 = vld [vmem:[%s273 + $0xcd] sm:$0xff]
      %v853 = vld [vmem:[%s273 + $0xd5] sm:$0xff]
      %v854 = vld [vmem:[%s273 + $0xdd] sm:$0xff]
      %v855 = vld [vmem:[%s273 + $0xe5] sm:$0xff]
      %v856 = vld [vmem:[%s273 + $0xed] sm:$0xff]
      %v857 = vld [vmem:[%s273 + $0xf5] sm:$0xff]
      %v858 = vld [vmem:[%s273 + $0xfd] sm:$0xff]
      %v859 = vld [vmem:[%s273 + $0x105] sm:$0xff]
      %v860 = vld [vmem:[%s273 + $0x10d] sm:$0xff]
      %v861 = vpack.c.bf16 %v852, %v851
      %v862 = vpack.c.bf16 %v854, %v853
      %v863 = vpack.c.bf16 %v856, %v855
      %v864 = vpack.c.bf16 %v858, %v857
      %v865 = vpack.c.bf16 %v860, %v859
      %s866 = scalar_lea.vmem %s1, 10
      %v867 = vld [vmem:[%s866] sm:$0x3]
      %v869 = vsel %vm313, %v861, 0
      %v872 = vsel %vm313, %v862, 0
      %v875 = vsel %vm313, %v863, 0
      %v878 = vsel %vm313, %v864, 0
      %v881 = vsel %vm313, %v865, 0
      %v884 = vsel %vm329, %v867, 0
      %886 = vmatprep.subr.bf16.mxu0 0
      %887 = vmatpush1.bf16.msra.mxu0 %v884
      %888 = vmatprep.subr.bf16.mxu0 0
      %889 = vmatpush1.bf16.msra.mxu0 0
      %890 = vmatprep.subr.bf16.mxu0 0
      %891 = vmatpush1.bf16.msra.mxu0 0
      %892 = vmatprep.subr.bf16.mxu0 0
      %893 = vmatpush1.bf16.msra.mxu0 0
      %894 = vmatprep.subr.bf16.mxu0 0
      %895 = vmatpush1.bf16.msra.mxu0 0
      %896 = vmatprep.subr.bf16.mxu0 0
      %897 = vmatpush1.bf16.msra.mxu0 0
      %898 = vmatprep.subr.bf16.mxu0 0
      %899 = vmatpush1.bf16.msra.mxu0 0
      %900 = vmatprep.subr.bf16.mxu0 0
      %901 = vmatpush1.bf16.msra.mxu0 0
      %902 = vmatprep.subr.bf16.mxu0 0
      %903 = vmatpush1.bf16.msra.mxu0 0
      %904 = vmatprep.subr.bf16.mxu0 0
      %905 = vmatpush1.bf16.msra.mxu0 0
      %906 = vmatprep.subr.bf16.mxu0 0
      %907 = vmatpush1.bf16.msra.mxu0 0
      %908 = vmatprep.subr.bf16.mxu0 0
      %909 = vmatpush1.bf16.msra.mxu0 0
      %910 = vmatprep.subr.bf16.mxu0 0
      %911 = vmatpush1.bf16.msra.mxu0 0
      %912 = vmatprep.subr.bf16.mxu0 0
      %913 = vmatpush1.bf16.msra.mxu0 0
      %914 = vmatprep.subr.bf16.mxu0 0
      %915 = vmatpush1.bf16.msra.mxu0 0
      %916 = vmatprep.subr.bf16.mxu0 0
      %917 = vmatpush1.bf16.msra.mxu0 0
      %918 = vmatprep.mubr.bf16.mxu0 0
      %919 = vmatmul.mubr.bf16.gmra.mrb[0].mxu0 %v869
      %v920 = vpop.f32.mrb[0].mxu0
      %v921 = vadd.f32 0.0, %v920
      %v922 = vpop.f32.mrb[0].mxu0
      %v923 = vpop.f32.mrb[0].mxu0
      %v924 = vadd.f32 0.0, %v923
      %v925 = vpop.f32.mrb[0].mxu0
      %926 = vmatprep.mubr.bf16.mxu0 0
      %927 = vmatmul.mubr.bf16.gmra.mrb[0].mxu0 %v872
      %v928 = vpop.f32.mrb[0].mxu0
      %v929 = vadd.f32 0.0, %v928
      %v930 = vpop.f32.mrb[0].mxu0
      %v931 = vpop.f32.mrb[0].mxu0
      %v932 = vadd.f32 0.0, %v931
      %v933 = vpop.f32.mrb[0].mxu0
      %934 = vmatprep.mubr.bf16.mxu0 0
      %935 = vmatmul.mubr.bf16.gmra.mrb[0].mxu0 %v875
      %v936 = vpop.f32.mrb[0].mxu0
      %v937 = vadd.f32 0.0, %v936
      %v938 = vpop.f32.mrb[0].mxu0
      %v939 = vpop.f32.mrb[0].mxu0
      %v940 = vadd.f32 0.0, %v939
      %v941 = vpop.f32.mrb[0].mxu0
      %942 = vmatprep.mubr.bf16.mxu0 0
      %943 = vmatmul.mubr.bf16.gmra.mrb[0].mxu0 %v878
      %v944 = vpop.f32.mrb[0].mxu0
      %v945 = vadd.f32 0.0, %v944
      %v946 = vpop.f32.mrb[0].mxu0
      %v947 = vpop.f32.mrb[0].mxu0
      %v948 = vadd.f32 0.0, %v947
      %v949 = vpop.f32.mrb[0].mxu0
      %950 = vmatprep.mubr.bf16.mxu0 0
      %951 = vmatmul.mubr.bf16.gmra.mrb[0].mxu0 %v881
      %v952 = vpop.f32.mrb[0].mxu0
      %v953 = vadd.f32 0.0, %v952
      %v954 = vpop.f32.mrb[0].mxu0
      %v955 = vpop.f32.mrb[0].mxu0
      %v956 = vadd.f32 0.0, %v955
      %v957 = vpop.f32.mrb[0].mxu0
      %958 = vdwg.mxu0
      %v959 = vadd.f32 %v841, %v921
      %v960 = vadd.f32 %v842, %v924
      %v961 = vadd.f32 %v843, %v929
      %v962 = vadd.f32 %v844, %v932
      %v963 = vadd.f32 %v845, %v937
      %v964 = vadd.f32 %v846, %v940
      %v965 = vadd.f32 %v847, %v945
      %v966 = vadd.f32 %v848, %v948
      %v967 = vadd.f32 %v849, %v953
      %v968 = vadd.f32 %v850, %v956
      %v969 = vld [vmem:[%s273 + $0xa] sm:$0xff]
      %v970 = vld [vmem:[%s273 + $0x12] sm:$0xff]
      %v971 = vld [vmem:[%s273 + $0x1a] sm:$0xff]
      %v972 = vld [vmem:[%s273 + $0x22] sm:$0xff]
      %v973 = vld [vmem:[%s273 + $0x2a] sm:$0xff]
      %v974 = vld [vmem:[%s273 + $0x32] sm:$0xff]
      %v975 = vld [vmem:[%s273 + $0x3a] sm:$0xff]
      %v976 = vld [vmem:[%s273 + $0x42] sm:$0xff]
      %v977 = vld [vmem:[%s273 + $0x4a] sm:$0xff]
      %v978 = vld [vmem:[%s273 + $0x52] sm:$0xff]
      %v979 = vpack.c.bf16 %v970, %v969
      %v980 = vpack.c.bf16 %v972, %v971
      %v981 = vpack.c.bf16 %v974, %v973
      %v982 = vpack.c.bf16 %v976, %v975
      %v983 = vpack.c.bf16 %v978, %v977
      %s984 = scalar_lea.vmem %s1, 12
      %v985 = vld [vmem:[%s984] sm:$0x3]
      %v987 = vsel %vm313, %v979, 0
      %v990 = vsel %vm313, %v980, 0
      %v993 = vsel %vm313, %v981, 0
      %v996 = vsel %vm313, %v982, 0
      %v999 = vsel %vm313, %v983, 0
      %v1002 = vsel %vm329, %v985, 0
      %1004 = vmatprep.subr.bf16.mxu0 0
      %1005 = vmatpush1.bf16.msra.mxu0 %v1002
      %1006 = vmatprep.subr.bf16.mxu0 0
      %1007 = vmatpush1.bf16.msra.mxu0 0
      %1008 = vmatprep.subr.bf16.mxu0 0
      %1009 = vmatpush1.bf16.msra.mxu0 0
      %1010 = vmatprep.subr.bf16.mxu0 0
      %1011 = vmatpush1.bf16.msra.mxu0 0
      %1012 = vmatprep.subr.bf16.mxu0 0
      %1013 = vmatpush1.bf16.msra.mxu0 0
      %1014 = vmatprep.subr.bf16.mxu0 0
      %1015 = vmatpush1.bf16.msra.mxu0 0
      %1016 = vmatprep.subr.bf16.mxu0 0
      %1017 = vmatpush1.bf16.msra.mxu0 0
      %1018 = vmatprep.subr.bf16.mxu0 0
      %1019 = vmatpush1.bf16.msra.mxu0 0
      %1020 = vmatprep.subr.bf16.mxu0 0
      %1021 = vmatpush1.bf16.msra.mxu0 0
      %1022 = vmatprep.subr.bf16.mxu0 0
      %1023 = vmatpush1.bf16.msra.mxu0 0
      %1024 = vmatprep.subr.bf16.mxu0 0
      %1025 = vmatpush1.bf16.msra.mxu0 0
      %1026 = vmatprep.subr.bf16.mxu0 0
      %1027 = vmatpush1.bf16.msra.mxu0 0
      %1028 = vmatprep.subr.bf16.mxu0 0
      %1029 = vmatpush1.bf16.msra.mxu0 0
      %1030 = vmatprep.subr.bf16.mxu0 0
      %1031 = vmatpush1.bf16.msra.mxu0 0
      %1032 = vmatprep.subr.bf16.mxu0 0
      %1033 = vmatpush1.bf16.msra.mxu0 0
      %1034 = vmatprep.subr.bf16.mxu0 0
      %1035 = vmatpush1.bf16.msra.mxu0 0
      %1036 = vmatprep.mubr.bf16.mxu0 0
      %1037 = vmatmul.mubr.bf16.gmra.mrb[0].mxu0 %v987
      %v1038 = vpop.f32.mrb[0].mxu0
      %v1039 = vadd.f32 0.0, %v1038
      %v1040 = vpop.f32.mrb[0].mxu0
      %v1041 = vpop.f32.mrb[0].mxu0
      %v1042 = vadd.f32 0.0, %v1041
      %v1043 = vpop.f32.mrb[0].mxu0
      %1044 = vmatprep.mubr.bf16.mxu0 0
      %1045 = vmatmul.mubr.bf16.gmra.mrb[0].mxu0 %v990
      %v1046 = vpop.f32.mrb[0].mxu0
      %v1047 = vadd.f32 0.0, %v1046
      %v1048 = vpop.f32.mrb[0].mxu0
      %v1049 = vpop.f32.mrb[0].mxu0
      %v1050 = vadd.f32 0.0, %v1049
      %v1051 = vpop.f32.mrb[0].mxu0
      %1052 = vmatprep.mubr.bf16.mxu0 0
      %1053 = vmatmul.mubr.bf16.gmra.mrb[0].mxu0 %v993
      %v1054 = vpop.f32.mrb[0].mxu0
      %v1055 = vadd.f32 0.0, %v1054
      %v1056 = vpop.f32.mrb[0].mxu0
      %v1057 = vpop.f32.mrb[0].mxu0
      %v1058 = vadd.f32 0.0, %v1057
      %v1059 = vpop.f32.mrb[0].mxu0
      %1060 = vmatprep.mubr.bf16.mxu0 0
      %1061 = vmatmul.mubr.bf16.gmra.mrb[0].mxu0 %v996
      %v1062 = vpop.f32.mrb[0].mxu0
      %v1063 = vadd.f32 0.0, %v1062
      %v1064 = vpop.f32.mrb[0].mxu0
      %v1065 = vpop.f32.mrb[0].mxu0
      %v1066 = vadd.f32 0.0, %v1065
      %v1067 = vpop.f32.mrb[0].mxu0
      %1068 = vmatprep.mubr.bf16.mxu0 0
      %1069 = vmatmul.mubr.bf16.gmra.mrb[0].mxu0 %v999
      %v1070 = vpop.f32.mrb[0].mxu0
      %v1071 = vadd.f32 0.0, %v1070
      %v1072 = vpop.f32.mrb[0].mxu0
      %v1073 = vpop.f32.mrb[0].mxu0
      %v1074 = vadd.f32 0.0, %v1073
      %v1075 = vpop.f32.mrb[0].mxu0
      %1076 = vdwg.mxu0
      %v1077 = vadd.f32 %v959, %v1039
      %v1078 = vadd.f32 %v960, %v1042
      %v1079 = vadd.f32 %v961, %v1047
      %v1080 = vadd.f32 %v962, %v1050
      %v1081 = vadd.f32 %v963, %v1055
      %v1082 = vadd.f32 %v964, %v1058
      %v1083 = vadd.f32 %v965, %v1063
      %v1084 = vadd.f32 %v966, %v1066
      %v1085 = vadd.f32 %v967, %v1071
      %v1086 = vadd.f32 %v968, %v1074
      %v1087 = vld [vmem:[%s273 + $0x6c] sm:$0xff]
      %v1088 = vld [vmem:[%s273 + $0x74] sm:$0xff]
      %v1089 = vld [vmem:[%s273 + $0x7c] sm:$0xff]
      %v1090 = vld [vmem:[%s273 + $0x84] sm:$0xff]
      %v1091 = vld [vmem:[%s273 + $0x8c] sm:$0xff]
      %v1092 = vld [vmem:[%s273 + $0x94] sm:$0xff]
      %v1093 = vld [vmem:[%s273 + $0x9c] sm:$0xff]
      %v1094 = vld [vmem:[%s273 + $0xa4] sm:$0xff]
      %v1095 = vld [vmem:[%s273 + $0xac] sm:$0xff]
      %v1096 = vld [vmem:[%s273 + $0xb4] sm:$0xff]
      %v1097 = vpack.c.bf16 %v1088, %v1087
      %v1098 = vpack.c.bf16 %v1090, %v1089
      %v1099 = vpack.c.bf16 %v1092, %v1091
      %v1100 = vpack.c.bf16 %v1094, %v1093
      %v1101 = vpack.c.bf16 %v1096, %v1095
      %s1102 = scalar_lea.vmem %s1, 14
      %v1103 = vld [vmem:[%s1102] sm:$0x3]
      %v1105 = vsel %vm313, %v1097, 0
      %v1108 = vsel %vm313, %v1098, 0
      %v1111 = vsel %vm313, %v1099, 0
      %v1114 = vsel %vm313, %v1100, 0
      %v1117 = vsel %vm313, %v1101, 0
      %v1120 = vsel %vm329, %v1103, 0
      %1122 = vmatprep.subr.bf16.mxu0 0
      %1123 = vmatpush1.bf16.msra.mxu0 %v1120
      %1124 = vmatprep.subr.bf16.mxu0 0
      %1125 = vmatpush1.bf16.msra.mxu0 0
      %1126 = vmatprep.subr.bf16.mxu0 0
      %1127 = vmatpush1.bf16.msra.mxu0 0
      %1128 = vmatprep.subr.bf16.mxu0 0
      %1129 = vmatpush1.bf16.msra.mxu0 0
      %1130 = vmatprep.subr.bf16.mxu0 0
      %1131 = vmatpush1.bf16.msra.mxu0 0
      %1132 = vmatprep.subr.bf16.mxu0 0
      %1133 = vmatpush1.bf16.msra.mxu0 0
      %1134 = vmatprep.subr.bf16.mxu0 0
      %1135 = vmatpush1.bf16.msra.mxu0 0
      %1136 = vmatprep.subr.bf16.mxu0 0
      %1137 = vmatpush1.bf16.msra.mxu0 0
      %1138 = vmatprep.subr.bf16.mxu0 0
      %1139 = vmatpush1.bf16.msra.mxu0 0
      %1140 = vmatprep.subr.bf16.mxu0 0
      %1141 = vmatpush1.bf16.msra.mxu0 0
      %1142 = vmatprep.subr.bf16.mxu0 0
      %1143 = vmatpush1.bf16.msra.mxu0 0
      %1144 = vmatprep.subr.bf16.mxu0 0
      %1145 = vmatpush1.bf16.msra.mxu0 0
      %1146 = vmatprep.subr.bf16.mxu0 0
      %1147 = vmatpush1.bf16.msra.mxu0 0
      %1148 = vmatprep.subr.bf16.mxu0 0
      %1149 = vmatpush1.bf16.msra.mxu0 0
      %1150 = vmatprep.subr.bf16.mxu0 0
      %1151 = vmatpush1.bf16.msra.mxu0 0
      %1152 = vmatprep.subr.bf16.mxu0 0
      %1153 = vmatpush1.bf16.msra.mxu0 0
      %1154 = vmatprep.mubr.bf16.mxu0 0
      %1155 = vmatmul.mubr.bf16.gmra.mrb[0].mxu0 %v1105
      %v1156 = vpop.f32.mrb[0].mxu0
      %v1157 = vadd.f32 0.0, %v1156
      %v1158 = vpop.f32.mrb[0].mxu0
      %v1159 = vpop.f32.mrb[0].mxu0
      %v1160 = vadd.f32 0.0, %v1159
      %v1161 = vpop.f32.mrb[0].mxu0
      %1162 = vmatprep.mubr.bf16.mxu0 0
      %1163 = vmatmul.mubr.bf16.gmra.mrb[0].mxu0 %v1108
      %v1164 = vpop.f32.mrb[0].mxu0
      %v1165 = vadd.f32 0.0, %v1164
      %v1166 = vpop.f32.mrb[0].mxu0
      %v1167 = vpop.f32.mrb[0].mxu0
      %v1168 = vadd.f32 0.0, %v1167
      %v1169 = vpop.f32.mrb[0].mxu0
      %1170 = vmatprep.mubr.bf16.mxu0 0
      %1171 = vmatmul.mubr.bf16.gmra.mrb[0].mxu0 %v1111
      %v1172 = vpop.f32.mrb[0].mxu0
      %v1173 = vadd.f32 0.0, %v1172
      %v1174 = vpop.f32.mrb[0].mxu0
      %v1175 = vpop.f32.mrb[0].mxu0
      %v1176 = vadd.f32 0.0, %v1175
      %v1177 = vpop.f32.mrb[0].mxu0
      %1178 = vmatprep.mubr.bf16.mxu0 0
      %1179 = vmatmul.mubr.bf16.gmra.mrb[0].mxu0 %v1114
      %v1180 = vpop.f32.mrb[0].mxu0
      %v1181 = vadd.f32 0.0, %v1180
      %v1182 = vpop.f32.mrb[0].mxu0
      %v1183 = vpop.f32.mrb[0].mxu0
      %v1184 = vadd.f32 0.0, %v1183
      %v1185 = vpop.f32.mrb[0].mxu0
      %1186 = vmatprep.mubr.bf16.mxu0 0
      %1187 = vmatmul.mubr.bf16.gmra.mrb[0].mxu0 %v1117
      %v1188 = vpop.f32.mrb[0].mxu0
      %v1189 = vadd.f32 0.0, %v1188
      %v1190 = vpop.f32.mrb[0].mxu0
      %v1191 = vpop.f32.mrb[0].mxu0
      %v1192 = vadd.f32 0.0, %v1191
      %v1193 = vpop.f32.mrb[0].mxu0
      %1194 = vdwg.mxu0
      %v1195 = vadd.f32 %v1077, %v1157
      %v1196 = vadd.f32 %v1078, %v1160
      %v1197 = vadd.f32 %v1079, %v1165
      %v1198 = vadd.f32 %v1080, %v1168
      %v1199 = vadd.f32 %v1081, %v1173
      %v1200 = vadd.f32 %v1082, %v1176
      %v1201 = vadd.f32 %v1083, %v1181
      %v1202 = vadd.f32 %v1084, %v1184
      %v1203 = vadd.f32 %v1085, %v1189
      %v1204 = vadd.f32 %v1086, %v1192
      %v1205 = vld [vmem:[%s273 + $0xb] sm:$0xff]
      %v1206 = vld [vmem:[%s273 + $0x13] sm:$0xff]
      %v1207 = vld [vmem:[%s273 + $0x1b] sm:$0xff]
      %v1208 = vld [vmem:[%s273 + $0x23] sm:$0xff]
      %v1209 = vld [vmem:[%s273 + $0x2b] sm:$0xff]
      %v1210 = vld [vmem:[%s273 + $0x33] sm:$0xff]
      %v1211 = vld [vmem:[%s273 + $0x3b] sm:$0xff]
      %v1212 = vld [vmem:[%s273 + $0x43] sm:$0xff]
      %v1213 = vld [vmem:[%s273 + $0x4b] sm:$0xff]
      %v1214 = vld [vmem:[%s273 + $0x53] sm:$0xff]
      %v1215 = vpack.c.bf16 %v1206, %v1205
      %v1216 = vpack.c.bf16 %v1208, %v1207
      %v1217 = vpack.c.bf16 %v1210, %v1209
      %v1218 = vpack.c.bf16 %v1212, %v1211
      %v1219 = vpack.c.bf16 %v1214, %v1213
      %s1220 = scalar_lea.vmem %s1, 16
      %v1221 = vld [vmem:[%s1220] sm:$0x3]
      %v1223 = vsel %vm313, %v1215, 0
      %v1226 = vsel %vm313, %v1216, 0
      %v1229 = vsel %vm313, %v1217, 0
      %v1232 = vsel %vm313, %v1218, 0
      %v1235 = vsel %vm313, %v1219, 0
      %v1238 = vsel %vm329, %v1221, 0
      %1240 = vmatprep.subr.bf16.mxu0 0
      %1241 = vmatpush1.bf16.msra.mxu0 %v1238
      %1242 = vmatprep.subr.bf16.mxu0 0
      %1243 = vmatpush1.bf16.msra.mxu0 0
      %1244 = vmatprep.subr.bf16.mxu0 0
      %1245 = vmatpush1.bf16.msra.mxu0 0
      %1246 = vmatprep.subr.bf16.mxu0 0
      %1247 = vmatpush1.bf16.msra.mxu0 0
      %1248 = vmatprep.subr.bf16.mxu0 0
      %1249 = vmatpush1.bf16.msra.mxu0 0
      %1250 = vmatprep.subr.bf16.mxu0 0
      %1251 = vmatpush1.bf16.msra.mxu0 0
      %1252 = vmatprep.subr.bf16.mxu0 0
      %1253 = vmatpush1.bf16.msra.mxu0 0
      %1254 = vmatprep.subr.bf16.mxu0 0
      %1255 = vmatpush1.bf16.msra.mxu0 0
      %1256 = vmatprep.subr.bf16.mxu0 0
      %1257 = vmatpush1.bf16.msra.mxu0 0
      %1258 = vmatprep.subr.bf16.mxu0 0
      %1259 = vmatpush1.bf16.msra.mxu0 0
      %1260 = vmatprep.subr.bf16.mxu0 0
      %1261 = vmatpush1.bf16.msra.mxu0 0
      %1262 = vmatprep.subr.bf16.mxu0 0
      %1263 = vmatpush1.bf16.msra.mxu0 0
      %1264 = vmatprep.subr.bf16.mxu0 0
      %1265 = vmatpush1.bf16.msra.mxu0 0
      %1266 = vmatprep.subr.bf16.mxu0 0
      %1267 = vmatpush1.bf16.msra.mxu0 0
      %1268 = vmatprep.subr.bf16.mxu0 0
      %1269 = vmatpush1.bf16.msra.mxu0 0
      %1270 = vmatprep.subr.bf16.mxu0 0
      %1271 = vmatpush1.bf16.msra.mxu0 0
      %1272 = vmatprep.mubr.bf16.mxu0 0
      %1273 = vmatmul.mubr.bf16.gmra.mrb[0].mxu0 %v1223
      %v1274 = vpop.f32.mrb[0].mxu0
      %v1275 = vadd.f32 0.0, %v1274
      %v1276 = vpop.f32.mrb[0].mxu0
      %v1277 = vpop.f32.mrb[0].mxu0
      %v1278 = vadd.f32 0.0, %v1277
      %v1279 = vpop.f32.mrb[0].mxu0
      %1280 = vmatprep.mubr.bf16.mxu0 0
      %1281 = vmatmul.mubr.bf16.gmra.mrb[0].mxu0 %v1226
      %v1282 = vpop.f32.mrb[0].mxu0
      %v1283 = vadd.f32 0.0, %v1282
      %v1284 = vpop.f32.mrb[0].mxu0
      %v1285 = vpop.f32.mrb[0].mxu0
      %v1286 = vadd.f32 0.0, %v1285
      %v1287 = vpop.f32.mrb[0].mxu0
      %1288 = vmatprep.mubr.bf16.mxu0 0
      %1289 = vmatmul.mubr.bf16.gmra.mrb[0].mxu0 %v1229
      %v1290 = vpop.f32.mrb[0].mxu0
      %v1291 = vadd.f32 0.0, %v1290
      %v1292 = vpop.f32.mrb[0].mxu0
      %v1293 = vpop.f32.mrb[0].mxu0
      %v1294 = vadd.f32 0.0, %v1293
      %v1295 = vpop.f32.mrb[0].mxu0
      %1296 = vmatprep.mubr.bf16.mxu0 0
      %1297 = vmatmul.mubr.bf16.gmra.mrb[0].mxu0 %v1232
      %v1298 = vpop.f32.mrb[0].mxu0
      %v1299 = vadd.f32 0.0, %v1298
      %v1300 = vpop.f32.mrb[0].mxu0
      %v1301 = vpop.f32.mrb[0].mxu0
      %v1302 = vadd.f32 0.0, %v1301
      %v1303 = vpop.f32.mrb[0].mxu0
      %1304 = vmatprep.mubr.bf16.mxu0 0
      %1305 = vmatmul.mubr.bf16.gmra.mrb[0].mxu0 %v1235
      %v1306 = vpop.f32.mrb[0].mxu0
      %v1307 = vadd.f32 0.0, %v1306
      %v1308 = vpop.f32.mrb[0].mxu0
      %v1309 = vpop.f32.mrb[0].mxu0
      %v1310 = vadd.f32 0.0, %v1309
      %v1311 = vpop.f32.mrb[0].mxu0
      %1312 = vdwg.mxu0
      %v1313 = vadd.f32 %v1195, %v1275
      %v1314 = vadd.f32 %v1196, %v1278
      %v1315 = vadd.f32 %v1197, %v1283
      %v1316 = vadd.f32 %v1198, %v1286
      %v1317 = vadd.f32 %v1199, %v1291
      %v1318 = vadd.f32 %v1200, %v1294
      %v1319 = vadd.f32 %v1201, %v1299
      %v1320 = vadd.f32 %v1202, %v1302
      %v1321 = vadd.f32 %v1203, %v1307
      %v1322 = vadd.f32 %v1204, %v1310
      %v1323 = vld [vmem:[%s4] sm:$0x1]
      %v1325 = vlaneseq
      %v1326 = vshrl.u32 %v1325, 7
      %v1327 = vsub.s32 0, %v1326
      %v1328 = vrot.slane %v1323, %v1327
      %v1330 = vadd.f32 %v1313, %v1328
      %v1331 = vadd.f32 %v1314, %v1328
      %v1332 = vadd.f32 %v1315, %v1328
      %v1333 = vadd.f32 %v1316, %v1328
      %v1334 = vadd.f32 %v1317, %v1328
      %v1335 = vadd.f32 %v1318, %v1328
      %v1336 = vadd.f32 %v1319, %v1328
      %v1337 = vadd.f32 %v1320, %v1328
      %v1338 = vadd.f32 %v1321, %v1328
      %v1339 = vadd.f32 %v1322, %v1328
      %v1340 = vmax.f32 %v1330, 0.0
      %v1341 = vmax.f32 %v1331, 0.0
      %v1342 = vmax.f32 %v1332, 0.0
      %v1343 = vmax.f32 %v1333, 0.0
      %v1344 = vmax.f32 %v1334, 0.0
      %v1345 = vmax.f32 %v1335, 0.0
      %v1346 = vmax.f32 %v1336, 0.0
      %v1347 = vmax.f32 %v1337, 0.0
      %v1348 = vmax.f32 %v1338, 0.0
      %v1349 = vmax.f32 %v1339, 0.0
      %v1350 = vld [vmem:[%s6] sm:$0xff]
      %v1351 = vld [vmem:[%s6 + $0x8] sm:$0xff]
      %v1352 = vld [vmem:[%s6 + $0x10] sm:$0xff]
      %v1353 = vld [vmem:[%s6 + $0x18] sm:$0xff]
      %v1354 = vld [vmem:[%s6 + $0x20] sm:$0xff]
      %v1355 = vld [vmem:[%s6 + $0x28] sm:$0xff]
      %v1356 = vld [vmem:[%s6 + $0x30] sm:$0xff]
      %v1357 = vld [vmem:[%s6 + $0x38] sm:$0xff]
      %v1358 = vld [vmem:[%s6 + $0x40] sm:$0xff]
      %v1359 = vld [vmem:[%s6 + $0x48] sm:$0xff]
      %1361 = vset.pattern.permute.xlu0 0
      %1362 = vperm.xlu0 %1361, %v1350
      %v1363 = vpop.permute.xlu0 %1362
      %1366 = vset.pattern.permute.xlu0 0
      %1367 = vperm.xlu0 %1366, %v1351
      %v1368 = vpop.permute.xlu0 %1367
      %1371 = vset.pattern.permute.xlu0 0
      %1372 = vperm.xlu0 %1371, %v1352
      %v1373 = vpop.permute.xlu0 %1372
      %1376 = vset.pattern.permute.xlu0 0
      %1377 = vperm.xlu0 %1376, %v1353
      %v1378 = vpop.permute.xlu0 %1377
      %1381 = vset.pattern.permute.xlu0 0
      %1382 = vperm.xlu0 %1381, %v1354
      %v1383 = vpop.permute.xlu0 %1382
      %1386 = vset.pattern.permute.xlu0 0
      %1387 = vperm.xlu0 %1386, %v1355
      %v1388 = vpop.permute.xlu0 %1387
      %1391 = vset.pattern.permute.xlu0 0
      %1392 = vperm.xlu0 %1391, %v1356
      %v1393 = vpop.permute.xlu0 %1392
      %1396 = vset.pattern.permute.xlu0 0
      %1397 = vperm.xlu0 %1396, %v1357
      %v1398 = vpop.permute.xlu0 %1397
      %1401 = vset.pattern.permute.xlu0 0
      %1402 = vperm.xlu0 %1401, %v1358
      %v1403 = vpop.permute.xlu0 %1402
      %1406 = vset.pattern.permute.xlu0 0
      %1407 = vperm.xlu0 %1406, %v1359
      %v1408 = vpop.permute.xlu0 %1407
      %v1410 = vmul.f32 %v1340, %v1363
      %v1411 = vmul.f32 %v1341, %v1368
      %v1412 = vmul.f32 %v1342, %v1373
      %v1413 = vmul.f32 %v1343, %v1378
      %v1414 = vmul.f32 %v1344, %v1383
      %v1415 = vmul.f32 %v1345, %v1388
      %v1416 = vmul.f32 %v1346, %v1393
      %v1417 = vmul.f32 %v1347, %v1398
      %v1418 = vmul.f32 %v1348, %v1403
      %v1419 = vmul.f32 %v1349, %v1408
      %vm1420 = vcmask 64512
      %1421 = vst.msk [vmem:[#allocation2] sm:$0xff] %vm1420, 0.0
      %1422 = vst.msk [vmem:[#allocation2 + $0x8] sm:$0xff] %vm1420, 0.0
      %1423 = vst.msk [vmem:[#allocation2 + $0x10] sm:$0xff] %vm1420, 0.0
      %1424 = vst.msk [vmem:[#allocation2 + $0x18] sm:$0xff] %vm1420, 0.0
      %1425 = vst.msk [vmem:[#allocation2 + $0x20] sm:$0xff] %vm1420, 0.0
      %1426 = vst.msk [vmem:[#allocation2 + $0x28] sm:$0xff] %vm1420, 0.0
      %1427 = vst.msk [vmem:[#allocation2 + $0x30] sm:$0xff] %vm1420, 0.0
      %1428 = vst.msk [vmem:[#allocation2 + $0x38] sm:$0xff] %vm1420, 0.0
      %1429 = vst.msk [vmem:[#allocation2 + $0x40] sm:$0xff] %vm1420, 0.0
      %1430 = vst.msk [vmem:[#allocation2 + $0x48] sm:$0xff] %vm1420, 0.0
      %1431 = vst.msk [vmem:[#allocation2 + $0x50] sm:$0xff] %vm1420, 0.0
      %1432 = vst.msk [vmem:[#allocation2 + $0x58] sm:$0xff] %vm1420, 0.0
      %1433 = vst.msk [vmem:[#allocation2 + $0x60] sm:$0xff] %vm1420, 0.0
      %vm1434 = vcmask 60416
      %1435 = vst.msk [vmem:[#allocation2 + $0x68] sm:$0xf] %vm1434, 0.0
      %1436 = vst.msk [vmem:[#allocation2 + $0xb] sm:$0xff] %vm1420, %v1410
      %1437 = vst.msk [vmem:[#allocation2 + $0x13] sm:$0xff] %vm1420, %v1411
      %1438 = vst.msk [vmem:[#allocation2 + $0x1b] sm:$0xff] %vm1420, %v1412
      %1439 = vst.msk [vmem:[#allocation2 + $0x23] sm:$0xff] %vm1420, %v1413
      %1440 = vst.msk [vmem:[#allocation2 + $0x2b] sm:$0xff] %vm1420, %v1414
      %1441 = vst.msk [vmem:[#allocation2 + $0x33] sm:$0xff] %vm1420, %v1415
      %1442 = vst.msk [vmem:[#allocation2 + $0x3b] sm:$0xff] %vm1420, %v1416
      %1443 = vst.msk [vmem:[#allocation2 + $0x43] sm:$0xff] %vm1420, %v1417
      %1444 = vst.msk [vmem:[#allocation2 + $0x4b] sm:$0xff] %vm1420, %v1418
      %1445 = vst.msk [vmem:[#allocation2 + $0x53] sm:$0xff] %vm1420, %v1419
      %v1446 = vld [vmem:[#allocation2] sm:$0xff]
      %v1447 = vld [vmem:[#allocation2 + $0x8] sm:$0xff]
      %v1448 = vld [vmem:[#allocation2 + $0x10] sm:$0xff]
      %v1449 = vld [vmem:[#allocation2 + $0x18] sm:$0xff]
      %v1450 = vld [vmem:[#allocation2 + $0x20] sm:$0xff]
      %v1451 = vld [vmem:[#allocation2 + $0x28] sm:$0xff]
      %v1452 = vld [vmem:[#allocation2 + $0x30] sm:$0xff]
      %v1453 = vld [vmem:[#allocation2 + $0x38] sm:$0xff]
      %v1454 = vld [vmem:[#allocation2 + $0x40] sm:$0xff]
      %v1455 = vld [vmem:[#allocation2 + $0x48] sm:$0xff]
      %v1456 = vpack.c.bf16 %v1447, %v1446
      %v1457 = vpack.c.bf16 %v1449, %v1448
      %v1458 = vpack.c.bf16 %v1451, %v1450
      %v1459 = vpack.c.bf16 %v1453, %v1452
      %v1460 = vpack.c.bf16 %v1455, %v1454
      %v1461 = vld [vmem:[%s2] sm:$0xf]
      %v1462 = vld [vmem:[#allocation2 + $0x1] sm:$0xff]
      %v1463 = vld [vmem:[#allocation2 + $0x9] sm:$0xff]
      %v1464 = vld [vmem:[#allocation2 + $0x11] sm:$0xff]
      %v1465 = vld [vmem:[#allocation2 + $0x19] sm:$0xff]
      %v1466 = vld [vmem:[#allocation2 + $0x21] sm:$0xff]
      %v1467 = vld [vmem:[#allocation2 + $0x29] sm:$0xff]
      %v1468 = vld [vmem:[#allocation2 + $0x31] sm:$0xff]
      %v1469 = vld [vmem:[#allocation2 + $0x39] sm:$0xff]
      %v1470 = vld [vmem:[#allocation2 + $0x41] sm:$0xff]
      %v1471 = vld [vmem:[#allocation2 + $0x49] sm:$0xff]
      %v1472 = vpack.c.bf16 %v1463, %v1462
      %v1473 = vpack.c.bf16 %v1465, %v1464
      %v1474 = vpack.c.bf16 %v1467, %v1466
      %v1475 = vpack.c.bf16 %v1469, %v1468
      %v1476 = vpack.c.bf16 %v1471, %v1470
      %s1477 = scalar_lea.vmem %s2, 4
      %v1478 = vld [vmem:[%s1477] sm:$0xf]
      %v1480 = vsel %vm1420, %v1472, 0
      %v1483 = vsel %vm1420, %v1473, 0
      %v1486 = vsel %vm1420, %v1474, 0
      %v1489 = vsel %vm1420, %v1475, 0
      %v1492 = vsel %vm1420, %v1476, 0
      %vm1494 = vcmask 1043456
      %v1496 = vsel %vm1494, %v1478, 0
      %1498 = vmatprep.subr.bf16.mxu0 0
      %1499 = vmatpush1.bf16.msra.mxu0 %v1496
      %1500 = vmatprep.subr.bf16.mxu0 0
      %1501 = vmatpush1.bf16.msra.mxu0 0
      %1502 = vmatprep.subr.bf16.mxu0 0
      %1503 = vmatpush1.bf16.msra.mxu0 0
      %1504 = vmatprep.subr.bf16.mxu0 0
      %1505 = vmatpush1.bf16.msra.mxu0 0
      %1506 = vmatprep.subr.bf16.mxu0 0
      %1507 = vmatpush1.bf16.msra.mxu0 0
      %1508 = vmatprep.subr.bf16.mxu0 0
      %1509 = vmatpush1.bf16.msra.mxu0 0
      %1510 = vmatprep.subr.bf16.mxu0 0
      %1511 = vmatpush1.bf16.msra.mxu0 0
      %1512 = vmatprep.subr.bf16.mxu0 0
      %1513 = vmatpush1.bf16.msra.mxu0 0
      %1514 = vmatprep.subr.bf16.mxu0 0
      %1515 = vmatpush1.bf16.msra.mxu0 0
      %1516 = vmatprep.subr.bf16.mxu0 0
      %1517 = vmatpush1.bf16.msra.mxu0 0
      %1518 = vmatprep.subr.bf16.mxu0 0
      %1519 = vmatpush1.bf16.msra.mxu0 0
      %1520 = vmatprep.subr.bf16.mxu0 0
      %1521 = vmatpush1.bf16.msra.mxu0 0
      %1522 = vmatprep.subr.bf16.mxu0 0
      %1523 = vmatpush1.bf16.msra.mxu0 0
      %1524 = vmatprep.subr.bf16.mxu0 0
      %1525 = vmatpush1.bf16.msra.mxu0 0
      %1526 = vmatprep.subr.bf16.mxu0 0
      %1527 = vmatpush1.bf16.msra.mxu0 0
      %1528 = vmatprep.subr.bf16.mxu0 0
      %1529 = vmatpush1.bf16.msra.mxu0 0
      %1530 = vmatprep.mubr.bf16.mxu0 0
      %1531 = vmatmul.mubr.bf16.gmra.mrb[0].mxu0 %v1480
      %v1532 = vpop.f32.mrb[0].mxu0
      %v1533 = vadd.f32 0.0, %v1532
      %v1534 = vpop.f32.mrb[0].mxu0
      %v1535 = vpop.f32.mrb[0].mxu0
      %v1536 = vadd.f32 0.0, %v1535
      %v1537 = vpop.f32.mrb[0].mxu0
      %1538 = vmatprep.mubr.bf16.mxu0 0
      %1539 = vmatmul.mubr.bf16.gmra.mrb[0].mxu0 %v1483
      %v1540 = vpop.f32.mrb[0].mxu0
      %v1541 = vadd.f32 0.0, %v1540
      %v1542 = vpop.f32.mrb[0].mxu0
      %v1543 = vpop.f32.mrb[0].mxu0
      %v1544 = vadd.f32 0.0, %v1543
      %v1545 = vpop.f32.mrb[0].mxu0
      %1546 = vmatprep.mubr.bf16.mxu0 0
      %1547 = vmatmul.mubr.bf16.gmra.mrb[0].mxu0 %v1486
      %v1548 = vpop.f32.mrb[0].mxu0
      %v1549 = vadd.f32 0.0, %v1548
      %v1550 = vpop.f32.mrb[0].mxu0
      %v1551 = vpop.f32.mrb[0].mxu0
      %v1552 = vadd.f32 0.0, %v1551
      %v1553 = vpop.f32.mrb[0].mxu0
      %1554 = vmatprep.mubr.bf16.mxu0 0
      %1555 = vmatmul.mubr.bf16.gmra.mrb[0].mxu0 %v1489
      %v1556 = vpop.f32.mrb[0].mxu0
      %v1557 = vadd.f32 0.0, %v1556
      %v1558 = vpop.f32.mrb[0].mxu0
      %v1559 = vpop.f32.mrb[0].mxu0
      %v1560 = vadd.f32 0.0, %v1559
      %v1561 = vpop.f32.mrb[0].mxu0
      %1562 = vmatprep.mubr.bf16.mxu0 0
      %1563 = vmatmul.mubr.bf16.gmra.mrb[0].mxu0 %v1492
      %v1564 = vpop.f32.mrb[0].mxu0
      %v1565 = vadd.f32 0.0, %v1564
      %v1566 = vpop.f32.mrb[0].mxu0
      %v1567 = vpop.f32.mrb[0].mxu0
      %v1568 = vadd.f32 0.0, %v1567
      %v1569 = vpop.f32.mrb[0].mxu0
      %1570 = vdwg.mxu0
      %v1572 = vsel %vm1420, %v1456, 0
      %v1575 = vsel %vm1420, %v1457, 0
      %v1578 = vsel %vm1420, %v1458, 0
      %v1581 = vsel %vm1420, %v1459, 0
      %v1584 = vsel %vm1420, %v1460, 0
      %v1587 = vsel %vm1494, %v1461, 0
      %1589 = vmatprep.subr.bf16.mxu0 0
      %1590 = vmatpush1.bf16.msra.mxu0 %v1587
      %1591 = vmatprep.subr.bf16.mxu0 0
      %1592 = vmatpush1.bf16.msra.mxu0 0
      %1593 = vmatprep.subr.bf16.mxu0 0
      %1594 = vmatpush1.bf16.msra.mxu0 0
      %1595 = vmatprep.subr.bf16.mxu0 0
      %1596 = vmatpush1.bf16.msra.mxu0 0
      %1597 = vmatprep.subr.bf16.mxu0 0
      %1598 = vmatpush1.bf16.msra.mxu0 0
      %1599 = vmatprep.subr.bf16.mxu0 0
      %1600 = vmatpush1.bf16.msra.mxu0 0
      %1601 = vmatprep.subr.bf16.mxu0 0
      %1602 = vmatpush1.bf16.msra.mxu0 0
      %1603 = vmatprep.subr.bf16.mxu0 0
      %1604 = vmatpush1.bf16.msra.mxu0 0
      %1605 = vmatprep.subr.bf16.mxu0 0
      %1606 = vmatpush1.bf16.msra.mxu0 0
      %1607 = vmatprep.subr.bf16.mxu0 0
      %1608 = vmatpush1.bf16.msra.mxu0 0
      %1609 = vmatprep.subr.bf16.mxu0 0
      %1610 = vmatpush1.bf16.msra.mxu0 0
      %1611 = vmatprep.subr.bf16.mxu0 0
      %1612 = vmatpush1.bf16.msra.mxu0 0
      %1613 = vmatprep.subr.bf16.mxu0 0
      %1614 = vmatpush1.bf16.msra.mxu0 0
      %1615 = vmatprep.subr.bf16.mxu0 0
      %1616 = vmatpush1.bf16.msra.mxu0 0
      %1617 = vmatprep.subr.bf16.mxu0 0
      %1618 = vmatpush1.bf16.msra.mxu0 0
      %1619 = vmatprep.subr.bf16.mxu0 0
      %1620 = vmatpush1.bf16.msra.mxu0 0
      %1621 = vmatprep.mubr.bf16.mxu0 0
      %1622 = vmatmul.mubr.bf16.gmra.mrb[0].mxu0 %v1572
      %v1623 = vpop.f32.mrb[0].mxu0
      %v1624 = vadd.f32 %v1533, %v1623
      %v1625 = vpop.f32.mrb[0].mxu0
      %v1626 = vpop.f32.mrb[0].mxu0
      %v1627 = vadd.f32 %v1536, %v1626
      %v1628 = vpop.f32.mrb[0].mxu0
      %1629 = vmatprep.mubr.bf16.mxu0 0
      %1630 = vmatmul.mubr.bf16.gmra.mrb[0].mxu0 %v1575
      %v1631 = vpop.f32.mrb[0].mxu0
      %v1632 = vadd.f32 %v1541, %v1631
      %v1633 = vpop.f32.mrb[0].mxu0
      %v1634 = vpop.f32.mrb[0].mxu0
      %v1635 = vadd.f32 %v1544, %v1634
      %v1636 = vpop.f32.mrb[0].mxu0
      %1637 = vmatprep.mubr.bf16.mxu0 0
      %1638 = vmatmul.mubr.bf16.gmra.mrb[0].mxu0 %v1578
      %v1639 = vpop.f32.mrb[0].mxu0
      %v1640 = vadd.f32 %v1549, %v1639
      %v1641 = vpop.f32.mrb[0].mxu0
      %v1642 = vpop.f32.mrb[0].mxu0
      %v1643 = vadd.f32 %v1552, %v1642
      %v1644 = vpop.f32.mrb[0].mxu0
      %1645 = vmatprep.mubr.bf16.mxu0 0
      %1646 = vmatmul.mubr.bf16.gmra.mrb[0].mxu0 %v1581
      %v1647 = vpop.f32.mrb[0].mxu0
      %v1648 = vadd.f32 %v1557, %v1647
      %v1649 = vpop.f32.mrb[0].mxu0
      %v1650 = vpop.f32.mrb[0].mxu0
      %v1651 = vadd.f32 %v1560, %v1650
      %v1652 = vpop.f32.mrb[0].mxu0
      %1653 = vmatprep.mubr.bf16.mxu0 0
      %1654 = vmatmul.mubr.bf16.gmra.mrb[0].mxu0 %v1584
      %v1655 = vpop.f32.mrb[0].mxu0
      %v1656 = vadd.f32 %v1565, %v1655
      %v1657 = vpop.f32.mrb[0].mxu0
      %v1658 = vpop.f32.mrb[0].mxu0
      %v1659 = vadd.f32 %v1568, %v1658
      %v1660 = vpop.f32.mrb[0].mxu0
      %1661 = vdwg.mxu0
      %v1662 = vld [vmem:[#allocation2 + $0x2] sm:$0xff]
      %v1663 = vld [vmem:[#allocation2 + $0xa] sm:$0xff]
      %v1664 = vld [vmem:[#allocation2 + $0x12] sm:$0xff]
      %v1665 = vld [vmem:[#allocation2 + $0x1a] sm:$0xff]
      %v1666 = vld [vmem:[#allocation2 + $0x22] sm:$0xff]
      %v1667 = vld [vmem:[#allocation2 + $0x2a] sm:$0xff]
      %v1668 = vld [vmem:[#allocation2 + $0x32] sm:$0xff]
      %v1669 = vld [vmem:[#allocation2 + $0x3a] sm:$0xff]
      %v1670 = vld [vmem:[#allocation2 + $0x42] sm:$0xff]
      %v1671 = vld [vmem:[#allocation2 + $0x4a] sm:$0xff]
      %v1672 = vpack.c.bf16 %v1663, %v1662
      %v1673 = vpack.c.bf16 %v1665, %v1664
      %v1674 = vpack.c.bf16 %v1667, %v1666
      %v1675 = vpack.c.bf16 %v1669, %v1668
      %v1676 = vpack.c.bf16 %v1671, %v1670
      %s1677 = scalar_lea.vmem %s2, 8
      %v1678 = vld [vmem:[%s1677] sm:$0xf]
      %v1680 = vsel %vm1420, %v1672, 0
      %v1683 = vsel %vm1420, %v1673, 0
      %v1686 = vsel %vm1420, %v1674, 0
      %v1689 = vsel %vm1420, %v1675, 0
      %v1692 = vsel %vm1420, %v1676, 0
      %v1695 = vsel %vm1494, %v1678, 0
      %1697 = vmatprep.subr.bf16.mxu0 0
      %1698 = vmatpush1.bf16.msra.mxu0 %v1695
      %1699 = vmatprep.subr.bf16.mxu0 0
      %1700 = vmatpush1.bf16.msra.mxu0 0
      %1701 = vmatprep.subr.bf16.mxu0 0
      %1702 = vmatpush1.bf16.msra.mxu0 0
      %1703 = vmatprep.subr.bf16.mxu0 0
      %1704 = vmatpush1.bf16.msra.mxu0 0
      %1705 = vmatprep.subr.bf16.mxu0 0
      %1706 = vmatpush1.bf16.msra.mxu0 0
      %1707 = vmatprep.subr.bf16.mxu0 0
      %1708 = vmatpush1.bf16.msra.mxu0 0
      %1709 = vmatprep.subr.bf16.mxu0 0
      %1710 = vmatpush1.bf16.msra.mxu0 0
      %1711 = vmatprep.subr.bf16.mxu0 0
      %1712 = vmatpush1.bf16.msra.mxu0 0
      %1713 = vmatprep.subr.bf16.mxu0 0
      %1714 = vmatpush1.bf16.msra.mxu0 0
      %1715 = vmatprep.subr.bf16.mxu0 0
      %1716 = vmatpush1.bf16.msra.mxu0 0
      %1717 = vmatprep.subr.bf16.mxu0 0
      %1718 = vmatpush1.bf16.msra.mxu0 0
      %1719 = vmatprep.subr.bf16.mxu0 0
      %1720 = vmatpush1.bf16.msra.mxu0 0
      %1721 = vmatprep.subr.bf16.mxu0 0
      %1722 = vmatpush1.bf16.msra.mxu0 0
      %1723 = vmatprep.subr.bf16.mxu0 0
      %1724 = vmatpush1.bf16.msra.mxu0 0
      %1725 = vmatprep.subr.bf16.mxu0 0
      %1726 = vmatpush1.bf16.msra.mxu0 0
      %1727 = vmatprep.subr.bf16.mxu0 0
      %1728 = vmatpush1.bf16.msra.mxu0 0
      %1729 = vmatprep.mubr.bf16.mxu0 0
      %1730 = vmatmul.mubr.bf16.gmra.mrb[0].mxu0 %v1680
      %v1731 = vpop.f32.mrb[0].mxu0
      %v1732 = vadd.f32 0.0, %v1731
      %v1733 = vpop.f32.mrb[0].mxu0
      %v1734 = vpop.f32.mrb[0].mxu0
      %v1735 = vadd.f32 0.0, %v1734
      %v1736 = vpop.f32.mrb[0].mxu0
      %1737 = vmatprep.mubr.bf16.mxu0 0
      %1738 = vmatmul.mubr.bf16.gmra.mrb[0].mxu0 %v1683
      %v1739 = vpop.f32.mrb[0].mxu0
      %v1740 = vadd.f32 0.0, %v1739
      %v1741 = vpop.f32.mrb[0].mxu0
      %v1742 = vpop.f32.mrb[0].mxu0
      %v1743 = vadd.f32 0.0, %v1742
      %v1744 = vpop.f32.mrb[0].mxu0
      %1745 = vmatprep.mubr.bf16.mxu0 0
      %1746 = vmatmul.mubr.bf16.gmra.mrb[0].mxu0 %v1686
      %v1747 = vpop.f32.mrb[0].mxu0
      %v1748 = vadd.f32 0.0, %v1747
      %v1749 = vpop.f32.mrb[0].mxu0
      %v1750 = vpop.f32.mrb[0].mxu0
      %v1751 = vadd.f32 0.0, %v1750
      %v1752 = vpop.f32.mrb[0].mxu0
      %1753 = vmatprep.mubr.bf16.mxu0 0
      %1754 = vmatmul.mubr.bf16.gmra.mrb[0].mxu0 %v1689
      %v1755 = vpop.f32.mrb[0].mxu0
      %v1756 = vadd.f32 0.0, %v1755
      %v1757 = vpop.f32.mrb[0].mxu0
      %v1758 = vpop.f32.mrb[0].mxu0
      %v1759 = vadd.f32 0.0, %v1758
      %v1760 = vpop.f32.mrb[0].mxu0
      %1761 = vmatprep.mubr.bf16.mxu0 0
      %1762 = vmatmul.mubr.bf16.gmra.mrb[0].mxu0 %v1692
      %v1763 = vpop.f32.mrb[0].mxu0
      %v1764 = vadd.f32 0.0, %v1763
      %v1765 = vpop.f32.mrb[0].mxu0
      %v1766 = vpop.f32.mrb[0].mxu0
      %v1767 = vadd.f32 0.0, %v1766
      %v1768 = vpop.f32.mrb[0].mxu0
      %1769 = vdwg.mxu0
      %v1770 = vadd.f32 %v1624, %v1732
      %v1771 = vadd.f32 %v1627, %v1735
      %v1772 = vadd.f32 %v1632, %v1740
      %v1773 = vadd.f32 %v1635, %v1743
      %v1774 = vadd.f32 %v1640, %v1748
      %v1775 = vadd.f32 %v1643, %v1751
      %v1776 = vadd.f32 %v1648, %v1756
      %v1777 = vadd.f32 %v1651, %v1759
      %v1778 = vadd.f32 %v1656, %v1764
      %v1779 = vadd.f32 %v1659, %v1767
      %v1780 = vld [vmem:[#allocation2 + $0xa] sm:$0xff]
      %v1781 = vld [vmem:[#allocation2 + $0x12] sm:$0xff]
      %v1782 = vld [vmem:[#allocation2 + $0x1a] sm:$0xff]
      %v1783 = vld [vmem:[#allocation2 + $0x22] sm:$0xff]
      %v1784 = vld [vmem:[#allocation2 + $0x2a] sm:$0xff]
      %v1785 = vld [vmem:[#allocation2 + $0x32] sm:$0xff]
      %v1786 = vld [vmem:[#allocation2 + $0x3a] sm:$0xff]
      %v1787 = vld [vmem:[#allocation2 + $0x42] sm:$0xff]
      %v1788 = vld [vmem:[#allocation2 + $0x4a] sm:$0xff]
      %v1789 = vld [vmem:[#allocation2 + $0x52] sm:$0xff]
      %v1790 = vpack.c.bf16 %v1781, %v1780
      %v1791 = vpack.c.bf16 %v1783, %v1782
      %v1792 = vpack.c.bf16 %v1785, %v1784
      %v1793 = vpack.c.bf16 %v1787, %v1786
      %v1794 = vpack.c.bf16 %v1789, %v1788
      %s1795 = scalar_lea.vmem %s2, 12
      %v1796 = vld [vmem:[%s1795] sm:$0xf]
      %v1798 = vsel %vm1420, %v1790, 0
      %v1801 = vsel %vm1420, %v1791, 0
      %v1804 = vsel %vm1420, %v1792, 0
      %v1807 = vsel %vm1420, %v1793, 0
      %v1810 = vsel %vm1420, %v1794, 0
      %v1813 = vsel %vm1494, %v1796, 0
      %1815 = vmatprep.subr.bf16.mxu0 0
      %1816 = vmatpush1.bf16.msra.mxu0 %v1813
      %1817 = vmatprep.subr.bf16.mxu0 0
      %1818 = vmatpush1.bf16.msra.mxu0 0
      %1819 = vmatprep.subr.bf16.mxu0 0
      %1820 = vmatpush1.bf16.msra.mxu0 0
      %1821 = vmatprep.subr.bf16.mxu0 0
      %1822 = vmatpush1.bf16.msra.mxu0 0
      %1823 = vmatprep.subr.bf16.mxu0 0
      %1824 = vmatpush1.bf16.msra.mxu0 0
      %1825 = vmatprep.subr.bf16.mxu0 0
      %1826 = vmatpush1.bf16.msra.mxu0 0
      %1827 = vmatprep.subr.bf16.mxu0 0
      %1828 = vmatpush1.bf16.msra.mxu0 0
      %1829 = vmatprep.subr.bf16.mxu0 0
      %1830 = vmatpush1.bf16.msra.mxu0 0
      %1831 = vmatprep.subr.bf16.mxu0 0
      %1832 = vmatpush1.bf16.msra.mxu0 0
      %1833 = vmatprep.subr.bf16.mxu0 0
      %1834 = vmatpush1.bf16.msra.mxu0 0
      %1835 = vmatprep.subr.bf16.mxu0 0
      %1836 = vmatpush1.bf16.msra.mxu0 0
      %1837 = vmatprep.subr.bf16.mxu0 0
      %1838 = vmatpush1.bf16.msra.mxu0 0
      %1839 = vmatprep.subr.bf16.mxu0 0
      %1840 = vmatpush1.bf16.msra.mxu0 0
      %1841 = vmatprep.subr.bf16.mxu0 0
      %1842 = vmatpush1.bf16.msra.mxu0 0
      %1843 = vmatprep.subr.bf16.mxu0 0
      %1844 = vmatpush1.bf16.msra.mxu0 0
      %1845 = vmatprep.subr.bf16.mxu0 0
      %1846 = vmatpush1.bf16.msra.mxu0 0
      %1847 = vmatprep.mubr.bf16.mxu0 0
      %1848 = vmatmul.mubr.bf16.gmra.mrb[0].mxu0 %v1798
      %v1849 = vpop.f32.mrb[0].mxu0
      %v1850 = vadd.f32 0.0, %v1849
      %v1851 = vpop.f32.mrb[0].mxu0
      %v1852 = vpop.f32.mrb[0].mxu0
      %v1853 = vadd.f32 0.0, %v1852
      %v1854 = vpop.f32.mrb[0].mxu0
      %1855 = vmatprep.mubr.bf16.mxu0 0
      %1856 = vmatmul.mubr.bf16.gmra.mrb[0].mxu0 %v1801
      %v1857 = vpop.f32.mrb[0].mxu0
      %v1858 = vadd.f32 0.0, %v1857
      %v1859 = vpop.f32.mrb[0].mxu0
      %v1860 = vpop.f32.mrb[0].mxu0
      %v1861 = vadd.f32 0.0, %v1860
      %v1862 = vpop.f32.mrb[0].mxu0
      %1863 = vmatprep.mubr.bf16.mxu0 0
      %1864 = vmatmul.mubr.bf16.gmra.mrb[0].mxu0 %v1804
      %v1865 = vpop.f32.mrb[0].mxu0
      %v1866 = vadd.f32 0.0, %v1865
      %v1867 = vpop.f32.mrb[0].mxu0
      %v1868 = vpop.f32.mrb[0].mxu0
      %v1869 = vadd.f32 0.0, %v1868
      %v1870 = vpop.f32.mrb[0].mxu0
      %1871 = vmatprep.mubr.bf16.mxu0 0
      %1872 = vmatmul.mubr.bf16.gmra.mrb[0].mxu0 %v1807
      %v1873 = vpop.f32.mrb[0].mxu0
      %v1874 = vadd.f32 0.0, %v1873
      %v1875 = vpop.f32.mrb[0].mxu0
      %v1876 = vpop.f32.mrb[0].mxu0
      %v1877 = vadd.f32 0.0, %v1876
      %v1878 = vpop.f32.mrb[0].mxu0
      %1879 = vmatprep.mubr.bf16.mxu0 0
      %1880 = vmatmul.mubr.bf16.gmra.mrb[0].mxu0 %v1810
      %v1881 = vpop.f32.mrb[0].mxu0
      %v1882 = vadd.f32 0.0, %v1881
      %v1883 = vpop.f32.mrb[0].mxu0
      %v1884 = vpop.f32.mrb[0].mxu0
      %v1885 = vadd.f32 0.0, %v1884
      %v1886 = vpop.f32.mrb[0].mxu0
      %1887 = vdwg.mxu0
      %v1888 = vadd.f32 %v1770, %v1850
      %v1889 = vadd.f32 %v1771, %v1853
      %v1890 = vadd.f32 %v1772, %v1858
      %v1891 = vadd.f32 %v1773, %v1861
      %v1892 = vadd.f32 %v1774, %v1866
      %v1893 = vadd.f32 %v1775, %v1869
      %v1894 = vadd.f32 %v1776, %v1874
      %v1895 = vadd.f32 %v1777, %v1877
      %v1896 = vadd.f32 %v1778, %v1882
      %v1897 = vadd.f32 %v1779, %v1885
      %v1898 = vld [vmem:[#allocation2 + $0xb] sm:$0xff]
      %v1899 = vld [vmem:[#allocation2 + $0x13] sm:$0xff]
      %v1900 = vld [vmem:[#allocation2 + $0x1b] sm:$0xff]
      %v1901 = vld [vmem:[#allocation2 + $0x23] sm:$0xff]
      %v1902 = vld [vmem:[#allocation2 + $0x2b] sm:$0xff]
      %v1903 = vld [vmem:[#allocation2 + $0x33] sm:$0xff]
      %v1904 = vld [vmem:[#allocation2 + $0x3b] sm:$0xff]
      %v1905 = vld [vmem:[#allocation2 + $0x43] sm:$0xff]
      %v1906 = vld [vmem:[#allocation2 + $0x4b] sm:$0xff]
      %v1907 = vld [vmem:[#allocation2 + $0x53] sm:$0xff]
      %v1908 = vpack.c.bf16 %v1899, %v1898
      %v1909 = vpack.c.bf16 %v1901, %v1900
      %v1910 = vpack.c.bf16 %v1903, %v1902
      %v1911 = vpack.c.bf16 %v1905, %v1904
      %v1912 = vpack.c.bf16 %v1907, %v1906
      %s1913 = scalar_lea.vmem %s2, 16
      %v1914 = vld [vmem:[%s1913] sm:$0xf]
      %v1916 = vsel %vm1420, %v1908, 0
      %v1919 = vsel %vm1420, %v1909, 0
      %v1922 = vsel %vm1420, %v1910, 0
      %v1925 = vsel %vm1420, %v1911, 0
      %v1928 = vsel %vm1420, %v1912, 0
      %v1931 = vsel %vm1494, %v1914, 0
      %1933 = vmatprep.subr.bf16.mxu0 0
      %1934 = vmatpush1.bf16.msra.mxu0 %v1931
      %1935 = vmatprep.subr.bf16.mxu0 0
      %1936 = vmatpush1.bf16.msra.mxu0 0
      %1937 = vmatprep.subr.bf16.mxu0 0
      %1938 = vmatpush1.bf16.msra.mxu0 0
      %1939 = vmatprep.subr.bf16.mxu0 0
      %1940 = vmatpush1.bf16.msra.mxu0 0
      %1941 = vmatprep.subr.bf16.mxu0 0
      %1942 = vmatpush1.bf16.msra.mxu0 0
      %1943 = vmatprep.subr.bf16.mxu0 0
      %1944 = vmatpush1.bf16.msra.mxu0 0
      %1945 = vmatprep.subr.bf16.mxu0 0
      %1946 = vmatpush1.bf16.msra.mxu0 0
      %1947 = vmatprep.subr.bf16.mxu0 0
      %1948 = vmatpush1.bf16.msra.mxu0 0
      %1949 = vmatprep.subr.bf16.mxu0 0
      %1950 = vmatpush1.bf16.msra.mxu0 0
      %1951 = vmatprep.subr.bf16.mxu0 0
      %1952 = vmatpush1.bf16.msra.mxu0 0
      %1953 = vmatprep.subr.bf16.mxu0 0
      %1954 = vmatpush1.bf16.msra.mxu0 0
      %1955 = vmatprep.subr.bf16.mxu0 0
      %1956 = vmatpush1.bf16.msra.mxu0 0
      %1957 = vmatprep.subr.bf16.mxu0 0
      %1958 = vmatpush1.bf16.msra.mxu0 0
      %1959 = vmatprep.subr.bf16.mxu0 0
      %1960 = vmatpush1.bf16.msra.mxu0 0
      %1961 = vmatprep.subr.bf16.mxu0 0
      %1962 = vmatpush1.bf16.msra.mxu0 0
      %1963 = vmatprep.subr.bf16.mxu0 0
      %1964 = vmatpush1.bf16.msra.mxu0 0
      %1965 = vmatprep.mubr.bf16.mxu0 0
      %1966 = vmatmul.mubr.bf16.gmra.mrb[0].mxu0 %v1916
      %v1967 = vpop.f32.mrb[0].mxu0
      %v1968 = vadd.f32 0.0, %v1967
      %v1969 = vpop.f32.mrb[0].mxu0
      %v1970 = vpop.f32.mrb[0].mxu0
      %v1971 = vadd.f32 0.0, %v1970
      %v1972 = vpop.f32.mrb[0].mxu0
      %1973 = vmatprep.mubr.bf16.mxu0 0
      %1974 = vmatmul.mubr.bf16.gmra.mrb[0].mxu0 %v1919
      %v1975 = vpop.f32.mrb[0].mxu0
      %v1976 = vadd.f32 0.0, %v1975
      %v1977 = vpop.f32.mrb[0].mxu0
      %v1978 = vpop.f32.mrb[0].mxu0
      %v1979 = vadd.f32 0.0, %v1978
      %v1980 = vpop.f32.mrb[0].mxu0
      %1981 = vmatprep.mubr.bf16.mxu0 0
      %1982 = vmatmul.mubr.bf16.gmra.mrb[0].mxu0 %v1922
      %v1983 = vpop.f32.mrb[0].mxu0
      %v1984 = vadd.f32 0.0, %v1983
      %v1985 = vpop.f32.mrb[0].mxu0
      %v1986 = vpop.f32.mrb[0].mxu0
      %v1987 = vadd.f32 0.0, %v1986
      %v1988 = vpop.f32.mrb[0].mxu0
      %1989 = vmatprep.mubr.bf16.mxu0 0
      %1990 = vmatmul.mubr.bf16.gmra.mrb[0].mxu0 %v1925
      %v1991 = vpop.f32.mrb[0].mxu0
      %v1992 = vadd.f32 0.0, %v1991
      %v1993 = vpop.f32.mrb[0].mxu0
      %v1994 = vpop.f32.mrb[0].mxu0
      %v1995 = vadd.f32 0.0, %v1994
      %v1996 = vpop.f32.mrb[0].mxu0
      %1997 = vmatprep.mubr.bf16.mxu0 0
      %1998 = vmatmul.mubr.bf16.gmra.mrb[0].mxu0 %v1928
      %v1999 = vpop.f32.mrb[0].mxu0
      %v2000 = vadd.f32 0.0, %v1999
      %v2001 = vpop.f32.mrb[0].mxu0
      %v2002 = vpop.f32.mrb[0].mxu0
      %v2003 = vadd.f32 0.0, %v2002
      %v2004 = vpop.f32.mrb[0].mxu0
      %2005 = vdwg.mxu0
      %v2006 = vadd.f32 %v1888, %v1968
      %v2007 = vadd.f32 %v1889, %v1971
      %v2008 = vadd.f32 %v1890, %v1976
      %v2009 = vadd.f32 %v1891, %v1979
      %v2010 = vadd.f32 %v1892, %v1984
      %v2011 = vadd.f32 %v1893, %v1987
      %v2012 = vadd.f32 %v1894, %v1992
      %v2013 = vadd.f32 %v1895, %v1995
      %v2014 = vadd.f32 %v1896, %v2000
      %v2015 = vadd.f32 %v1897, %v2003
      %v2016 = vld [vmem:[#allocation2 + $0xc] sm:$0xff]
      %v2017 = vld [vmem:[#allocation2 + $0x14] sm:$0xff]
      %v2018 = vld [vmem:[#allocation2 + $0x1c] sm:$0xff]
      %v2019 = vld [vmem:[#allocation2 + $0x24] sm:$0xff]
      %v2020 = vld [vmem:[#allocation2 + $0x2c] sm:$0xff]
      %v2021 = vld [vmem:[#allocation2 + $0x34] sm:$0xff]
      %v2022 = vld [vmem:[#allocation2 + $0x3c] sm:$0xff]
      %v2023 = vld [vmem:[#allocation2 + $0x44] sm:$0xff]
      %v2024 = vld [vmem:[#allocation2 + $0x4c] sm:$0xff]
      %v2025 = vld [vmem:[#allocation2 + $0x54] sm:$0xff]
      %v2026 = vpack.c.bf16 %v2017, %v2016
      %v2027 = vpack.c.bf16 %v2019, %v2018
      %v2028 = vpack.c.bf16 %v2021, %v2020
      %v2029 = vpack.c.bf16 %v2023, %v2022
      %v2030 = vpack.c.bf16 %v2025, %v2024
      %s2031 = scalar_lea.vmem %s2, 20
      %v2032 = vld [vmem:[%s2031] sm:$0xf]
      %v2034 = vsel %vm1420, %v2026, 0
      %v2037 = vsel %vm1420, %v2027, 0
      %v2040 = vsel %vm1420, %v2028, 0
      %v2043 = vsel %vm1420, %v2029, 0
      %v2046 = vsel %vm1420, %v2030, 0
      %v2049 = vsel %vm1494, %v2032, 0
      %2051 = vmatprep.subr.bf16.mxu0 0
      %2052 = vmatpush1.bf16.msra.mxu0 %v2049
      %2053 = vmatprep.subr.bf16.mxu0 0
      %2054 = vmatpush1.bf16.msra.mxu0 0
      %2055 = vmatprep.subr.bf16.mxu0 0
      %2056 = vmatpush1.bf16.msra.mxu0 0
      %2057 = vmatprep.subr.bf16.mxu0 0
      %2058 = vmatpush1.bf16.msra.mxu0 0
      %2059 = vmatprep.subr.bf16.mxu0 0
      %2060 = vmatpush1.bf16.msra.mxu0 0
      %2061 = vmatprep.subr.bf16.mxu0 0
      %2062 = vmatpush1.bf16.msra.mxu0 0
      %2063 = vmatprep.subr.bf16.mxu0 0
      %2064 = vmatpush1.bf16.msra.mxu0 0
      %2065 = vmatprep.subr.bf16.mxu0 0
      %2066 = vmatpush1.bf16.msra.mxu0 0
      %2067 = vmatprep.subr.bf16.mxu0 0
      %2068 = vmatpush1.bf16.msra.mxu0 0
      %2069 = vmatprep.subr.bf16.mxu0 0
      %2070 = vmatpush1.bf16.msra.mxu0 0
      %2071 = vmatprep.subr.bf16.mxu0 0
      %2072 = vmatpush1.bf16.msra.mxu0 0
      %2073 = vmatprep.subr.bf16.mxu0 0
      %2074 = vmatpush1.bf16.msra.mxu0 0
      %2075 = vmatprep.subr.bf16.mxu0 0
      %2076 = vmatpush1.bf16.msra.mxu0 0
      %2077 = vmatprep.subr.bf16.mxu0 0
      %2078 = vmatpush1.bf16.msra.mxu0 0
      %2079 = vmatprep.subr.bf16.mxu0 0
      %2080 = vmatpush1.bf16.msra.mxu0 0
      %2081 = vmatprep.subr.bf16.mxu0 0
      %2082 = vmatpush1.bf16.msra.mxu0 0
      %2083 = vmatprep.mubr.bf16.mxu0 0
      %2084 = vmatmul.mubr.bf16.gmra.mrb[0].mxu0 %v2034
      %v2085 = vpop.f32.mrb[0].mxu0
      %v2086 = vadd.f32 0.0, %v2085
      %v2087 = vpop.f32.mrb[0].mxu0
      %v2088 = vpop.f32.mrb[0].mxu0
      %v2089 = vadd.f32 0.0, %v2088
      %v2090 = vpop.f32.mrb[0].mxu0
      %2091 = vmatprep.mubr.bf16.mxu0 0
      %2092 = vmatmul.mubr.bf16.gmra.mrb[0].mxu0 %v2037
      %v2093 = vpop.f32.mrb[0].mxu0
      %v2094 = vadd.f32 0.0, %v2093
      %v2095 = vpop.f32.mrb[0].mxu0
      %v2096 = vpop.f32.mrb[0].mxu0
      %v2097 = vadd.f32 0.0, %v2096
      %v2098 = vpop.f32.mrb[0].mxu0
      %2099 = vmatprep.mubr.bf16.mxu0 0
      %2100 = vmatmul.mubr.bf16.gmra.mrb[0].mxu0 %v2040
      %v2101 = vpop.f32.mrb[0].mxu0
      %v2102 = vadd.f32 0.0, %v2101
      %v2103 = vpop.f32.mrb[0].mxu0
      %v2104 = vpop.f32.mrb[0].mxu0
      %v2105 = vadd.f32 0.0, %v2104
      %v2106 = vpop.f32.mrb[0].mxu0
      %2107 = vmatprep.mubr.bf16.mxu0 0
      %2108 = vmatmul.mubr.bf16.gmra.mrb[0].mxu0 %v2043
      %v2109 = vpop.f32.mrb[0].mxu0
      %v2110 = vadd.f32 0.0, %v2109
      %v2111 = vpop.f32.mrb[0].mxu0
      %v2112 = vpop.f32.mrb[0].mxu0
      %v2113 = vadd.f32 0.0, %v2112
      %v2114 = vpop.f32.mrb[0].mxu0
      %2115 = vmatprep.mubr.bf16.mxu0 0
      %2116 = vmatmul.mubr.bf16.gmra.mrb[0].mxu0 %v2046
      %v2117 = vpop.f32.mrb[0].mxu0
      %v2118 = vadd.f32 0.0, %v2117
      %v2119 = vpop.f32.mrb[0].mxu0
      %v2120 = vpop.f32.mrb[0].mxu0
      %v2121 = vadd.f32 0.0, %v2120
      %v2122 = vpop.f32.mrb[0].mxu0
      %2123 = vdwg.mxu0
      %v2124 = vadd.f32 %v2006, %v2086
      %v2125 = vadd.f32 %v2007, %v2089
      %v2126 = vadd.f32 %v2008, %v2094
      %v2127 = vadd.f32 %v2009, %v2097
      %v2128 = vadd.f32 %v2010, %v2102
      %v2129 = vadd.f32 %v2011, %v2105
      %v2130 = vadd.f32 %v2012, %v2110
      %v2131 = vadd.f32 %v2013, %v2113
      %v2132 = vadd.f32 %v2014, %v2118
      %v2133 = vadd.f32 %v2015, %v2121
      %v2134 = vld [vmem:[#allocation2 + $0x14] sm:$0xff]
      %v2135 = vld [vmem:[#allocation2 + $0x1c] sm:$0xff]
      %v2136 = vld [vmem:[#allocation2 + $0x24] sm:$0xff]
      %v2137 = vld [vmem:[#allocation2 + $0x2c] sm:$0xff]
      %v2138 = vld [vmem:[#allocation2 + $0x34] sm:$0xff]
      %v2139 = vld [vmem:[#allocation2 + $0x3c] sm:$0xff]
      %v2140 = vld [vmem:[#allocation2 + $0x44] sm:$0xff]
      %v2141 = vld [vmem:[#allocation2 + $0x4c] sm:$0xff]
      %v2142 = vld [vmem:[#allocation2 + $0x54] sm:$0xff]
      %v2143 = vld [vmem:[#allocation2 + $0x5c] sm:$0xff]
      %v2144 = vpack.c.bf16 %v2135, %v2134
      %v2145 = vpack.c.bf16 %v2137, %v2136
      %v2146 = vpack.c.bf16 %v2139, %v2138
      %v2147 = vpack.c.bf16 %v2141, %v2140
      %v2148 = vpack.c.bf16 %v2143, %v2142
      %s2149 = scalar_lea.vmem %s2, 24
      %v2150 = vld [vmem:[%s2149] sm:$0xf]
      %v2152 = vsel %vm1420, %v2144, 0
      %v2155 = vsel %vm1420, %v2145, 0
      %v2158 = vsel %vm1420, %v2146, 0
      %v2161 = vsel %vm1420, %v2147, 0
      %v2164 = vsel %vm1420, %v2148, 0
      %v2167 = vsel %vm1494, %v2150, 0
      %2169 = vmatprep.subr.bf16.mxu0 0
      %2170 = vmatpush1.bf16.msra.mxu0 %v2167
      %2171 = vmatprep.subr.bf16.mxu0 0
      %2172 = vmatpush1.bf16.msra.mxu0 0
      %2173 = vmatprep.subr.bf16.mxu0 0
      %2174 = vmatpush1.bf16.msra.mxu0 0
      %2175 = vmatprep.subr.bf16.mxu0 0
      %2176 = vmatpush1.bf16.msra.mxu0 0
      %2177 = vmatprep.subr.bf16.mxu0 0
      %2178 = vmatpush1.bf16.msra.mxu0 0
      %2179 = vmatprep.subr.bf16.mxu0 0
      %2180 = vmatpush1.bf16.msra.mxu0 0
      %2181 = vmatprep.subr.bf16.mxu0 0
      %2182 = vmatpush1.bf16.msra.mxu0 0
      %2183 = vmatprep.subr.bf16.mxu0 0
      %2184 = vmatpush1.bf16.msra.mxu0 0
      %2185 = vmatprep.subr.bf16.mxu0 0
      %2186 = vmatpush1.bf16.msra.mxu0 0
      %2187 = vmatprep.subr.bf16.mxu0 0
      %2188 = vmatpush1.bf16.msra.mxu0 0
      %2189 = vmatprep.subr.bf16.mxu0 0
      %2190 = vmatpush1.bf16.msra.mxu0 0
      %2191 = vmatprep.subr.bf16.mxu0 0
      %2192 = vmatpush1.bf16.msra.mxu0 0
      %2193 = vmatprep.subr.bf16.mxu0 0
      %2194 = vmatpush1.bf16.msra.mxu0 0
      %2195 = vmatprep.subr.bf16.mxu0 0
      %2196 = vmatpush1.bf16.msra.mxu0 0
      %2197 = vmatprep.subr.bf16.mxu0 0
      %2198 = vmatpush1.bf16.msra.mxu0 0
      %2199 = vmatprep.subr.bf16.mxu0 0
      %2200 = vmatpush1.bf16.msra.mxu0 0
      %2201 = vmatprep.mubr.bf16.mxu0 0
      %2202 = vmatmul.mubr.bf16.gmra.mrb[0].mxu0 %v2152
      %v2203 = vpop.f32.mrb[0].mxu0
      %v2204 = vadd.f32 0.0, %v2203
      %v2205 = vpop.f32.mrb[0].mxu0
      %v2206 = vpop.f32.mrb[0].mxu0
      %v2207 = vadd.f32 0.0, %v2206
      %v2208 = vpop.f32.mrb[0].mxu0
      %2209 = vmatprep.mubr.bf16.mxu0 0
      %2210 = vmatmul.mubr.bf16.gmra.mrb[0].mxu0 %v2155
      %v2211 = vpop.f32.mrb[0].mxu0
      %v2212 = vadd.f32 0.0, %v2211
      %v2213 = vpop.f32.mrb[0].mxu0
      %v2214 = vpop.f32.mrb[0].mxu0
      %v2215 = vadd.f32 0.0, %v2214
      %v2216 = vpop.f32.mrb[0].mxu0
      %2217 = vmatprep.mubr.bf16.mxu0 0
      %2218 = vmatmul.mubr.bf16.gmra.mrb[0].mxu0 %v2158
      %v2219 = vpop.f32.mrb[0].mxu0
      %v2220 = vadd.f32 0.0, %v2219
      %v2221 = vpop.f32.mrb[0].mxu0
      %v2222 = vpop.f32.mrb[0].mxu0
      %v2223 = vadd.f32 0.0, %v2222
      %v2224 = vpop.f32.mrb[0].mxu0
      %2225 = vmatprep.mubr.bf16.mxu0 0
      %2226 = vmatmul.mubr.bf16.gmra.mrb[0].mxu0 %v2161
      %v2227 = vpop.f32.mrb[0].mxu0
      %v2228 = vadd.f32 0.0, %v2227
      %v2229 = vpop.f32.mrb[0].mxu0
      %v2230 = vpop.f32.mrb[0].mxu0
      %v2231 = vadd.f32 0.0, %v2230
      %v2232 = vpop.f32.mrb[0].mxu0
      %2233 = vmatprep.mubr.bf16.mxu0 0
      %2234 = vmatmul.mubr.bf16.gmra.mrb[0].mxu0 %v2164
      %v2235 = vpop.f32.mrb[0].mxu0
      %v2236 = vadd.f32 0.0, %v2235
      %v2237 = vpop.f32.mrb[0].mxu0
      %v2238 = vpop.f32.mrb[0].mxu0
      %v2239 = vadd.f32 0.0, %v2238
      %v2240 = vpop.f32.mrb[0].mxu0
      %2241 = vdwg.mxu0
      %v2242 = vadd.f32 %v2124, %v2204
      %v2243 = vadd.f32 %v2125, %v2207
      %v2244 = vadd.f32 %v2126, %v2212
      %v2245 = vadd.f32 %v2127, %v2215
      %v2246 = vadd.f32 %v2128, %v2220
      %v2247 = vadd.f32 %v2129, %v2223
      %v2248 = vadd.f32 %v2130, %v2228
      %v2249 = vadd.f32 %v2131, %v2231
      %v2250 = vadd.f32 %v2132, %v2236
      %v2251 = vadd.f32 %v2133, %v2239
      %v2252 = vld [vmem:[#allocation2 + $0x15] sm:$0xff]
      %v2253 = vld [vmem:[#allocation2 + $0x1d] sm:$0xff]
      %v2254 = vld [vmem:[#allocation2 + $0x25] sm:$0xff]
      %v2255 = vld [vmem:[#allocation2 + $0x2d] sm:$0xff]
      %v2256 = vld [vmem:[#allocation2 + $0x35] sm:$0xff]
      %v2257 = vld [vmem:[#allocation2 + $0x3d] sm:$0xff]
      %v2258 = vld [vmem:[#allocation2 + $0x45] sm:$0xff]
      %v2259 = vld [vmem:[#allocation2 + $0x4d] sm:$0xff]
      %v2260 = vld [vmem:[#allocation2 + $0x55] sm:$0xff]
      %v2261 = vld [vmem:[#allocation2 + $0x5d] sm:$0xff]
      %v2262 = vpack.c.bf16 %v2253, %v2252
      %v2263 = vpack.c.bf16 %v2255, %v2254
      %v2264 = vpack.c.bf16 %v2257, %v2256
      %v2265 = vpack.c.bf16 %v2259, %v2258
      %v2266 = vpack.c.bf16 %v2261, %v2260
      %s2267 = scalar_lea.vmem %s2, 28
      %v2268 = vld [vmem:[%s2267] sm:$0xf]
      %v2270 = vsel %vm1420, %v2262, 0
      %v2273 = vsel %vm1420, %v2263, 0
      %v2276 = vsel %vm1420, %v2264, 0
      %v2279 = vsel %vm1420, %v2265, 0
      %v2282 = vsel %vm1420, %v2266, 0
      %v2285 = vsel %vm1494, %v2268, 0
      %2287 = vmatprep.subr.bf16.mxu0 0
      %2288 = vmatpush1.bf16.msra.mxu0 %v2285
      %2289 = vmatprep.subr.bf16.mxu0 0
      %2290 = vmatpush1.bf16.msra.mxu0 0
      %2291 = vmatprep.subr.bf16.mxu0 0
      %2292 = vmatpush1.bf16.msra.mxu0 0
      %2293 = vmatprep.subr.bf16.mxu0 0
      %2294 = vmatpush1.bf16.msra.mxu0 0
      %2295 = vmatprep.subr.bf16.mxu0 0
      %2296 = vmatpush1.bf16.msra.mxu0 0
      %2297 = vmatprep.subr.bf16.mxu0 0
      %2298 = vmatpush1.bf16.msra.mxu0 0
      %2299 = vmatprep.subr.bf16.mxu0 0
      %2300 = vmatpush1.bf16.msra.mxu0 0
      %2301 = vmatprep.subr.bf16.mxu0 0
      %2302 = vmatpush1.bf16.msra.mxu0 0
      %2303 = vmatprep.subr.bf16.mxu0 0
      %2304 = vmatpush1.bf16.msra.mxu0 0
      %2305 = vmatprep.subr.bf16.mxu0 0
      %2306 = vmatpush1.bf16.msra.mxu0 0
      %2307 = vmatprep.subr.bf16.mxu0 0
      %2308 = vmatpush1.bf16.msra.mxu0 0
      %2309 = vmatprep.subr.bf16.mxu0 0
      %2310 = vmatpush1.bf16.msra.mxu0 0
      %2311 = vmatprep.subr.bf16.mxu0 0
      %2312 = vmatpush1.bf16.msra.mxu0 0
      %2313 = vmatprep.subr.bf16.mxu0 0
      %2314 = vmatpush1.bf16.msra.mxu0 0
      %2315 = vmatprep.subr.bf16.mxu0 0
      %2316 = vmatpush1.bf16.msra.mxu0 0
      %2317 = vmatprep.subr.bf16.mxu0 0
      %2318 = vmatpush1.bf16.msra.mxu0 0
      %2319 = vmatprep.mubr.bf16.mxu0 0
      %2320 = vmatmul.mubr.bf16.gmra.mrb[0].mxu0 %v2270
      %v2321 = vpop.f32.mrb[0].mxu0
      %v2322 = vadd.f32 0.0, %v2321
      %v2323 = vpop.f32.mrb[0].mxu0
      %v2324 = vpop.f32.mrb[0].mxu0
      %v2325 = vadd.f32 0.0, %v2324
      %v2326 = vpop.f32.mrb[0].mxu0
      %2327 = vmatprep.mubr.bf16.mxu0 0
      %2328 = vmatmul.mubr.bf16.gmra.mrb[0].mxu0 %v2273
      %v2329 = vpop.f32.mrb[0].mxu0
      %v2330 = vadd.f32 0.0, %v2329
      %v2331 = vpop.f32.mrb[0].mxu0
      %v2332 = vpop.f32.mrb[0].mxu0
      %v2333 = vadd.f32 0.0, %v2332
      %v2334 = vpop.f32.mrb[0].mxu0
      %2335 = vmatprep.mubr.bf16.mxu0 0
      %2336 = vmatmul.mubr.bf16.gmra.mrb[0].mxu0 %v2276
      %v2337 = vpop.f32.mrb[0].mxu0
      %v2338 = vadd.f32 0.0, %v2337
      %v2339 = vpop.f32.mrb[0].mxu0
      %v2340 = vpop.f32.mrb[0].mxu0
      %v2341 = vadd.f32 0.0, %v2340
      %v2342 = vpop.f32.mrb[0].mxu0
      %2343 = vmatprep.mubr.bf16.mxu0 0
      %2344 = vmatmul.mubr.bf16.gmra.mrb[0].mxu0 %v2279
      %v2345 = vpop.f32.mrb[0].mxu0
      %v2346 = vadd.f32 0.0, %v2345
      %v2347 = vpop.f32.mrb[0].mxu0
      %v2348 = vpop.f32.mrb[0].mxu0
      %v2349 = vadd.f32 0.0, %v2348
      %v2350 = vpop.f32.mrb[0].mxu0
      %2351 = vmatprep.mubr.bf16.mxu0 0
      %2352 = vmatmul.mubr.bf16.gmra.mrb[0].mxu0 %v2282
      %v2353 = vpop.f32.mrb[0].mxu0
      %v2354 = vadd.f32 0.0, %v2353
      %v2355 = vpop.f32.mrb[0].mxu0
      %v2356 = vpop.f32.mrb[0].mxu0
      %v2357 = vadd.f32 0.0, %v2356
      %v2358 = vpop.f32.mrb[0].mxu0
      %2359 = vdwg.mxu0
      %v2360 = vadd.f32 %v2242, %v2322
      %v2361 = vadd.f32 %v2243, %v2325
      %v2362 = vadd.f32 %v2244, %v2330
      %v2363 = vadd.f32 %v2245, %v2333
      %v2364 = vadd.f32 %v2246, %v2338
      %v2365 = vadd.f32 %v2247, %v2341
      %v2366 = vadd.f32 %v2248, %v2346
      %v2367 = vadd.f32 %v2249, %v2349
      %v2368 = vadd.f32 %v2250, %v2354
      %v2369 = vadd.f32 %v2251, %v2357
      %v2370 = vld [vmem:[#allocation2 + $0x16] sm:$0xff]
      %v2371 = vld [vmem:[#allocation2 + $0x1e] sm:$0xff]
      %v2372 = vld [vmem:[#allocation2 + $0x26] sm:$0xff]
      %v2373 = vld [vmem:[#allocation2 + $0x2e] sm:$0xff]
      %v2374 = vld [vmem:[#allocation2 + $0x36] sm:$0xff]
      %v2375 = vld [vmem:[#allocation2 + $0x3e] sm:$0xff]
      %v2376 = vld [vmem:[#allocation2 + $0x46] sm:$0xff]
      %v2377 = vld [vmem:[#allocation2 + $0x4e] sm:$0xff]
      %v2378 = vld [vmem:[#allocation2 + $0x56] sm:$0xff]
      %v2379 = vld [vmem:[#allocation2 + $0x5e] sm:$0xff]
      %v2380 = vpack.c.bf16 %v2371, %v2370
      %v2381 = vpack.c.bf16 %v2373, %v2372
      %v2382 = vpack.c.bf16 %v2375, %v2374
      %v2383 = vpack.c.bf16 %v2377, %v2376
      %v2384 = vpack.c.bf16 %v2379, %v2378
      %s2385 = scalar_lea.vmem %s2, 32
      %v2386 = vld [vmem:[%s2385] sm:$0xf]
      %v2388 = vsel %vm1420, %v2380, 0
      %v2391 = vsel %vm1420, %v2381, 0
      %v2394 = vsel %vm1420, %v2382, 0
      %v2397 = vsel %vm1420, %v2383, 0
      %v2400 = vsel %vm1420, %v2384, 0
      %v2403 = vsel %vm1494, %v2386, 0
      %2405 = vmatprep.subr.bf16.mxu0 0
      %2406 = vmatpush1.bf16.msra.mxu0 %v2403
      %2407 = vmatprep.subr.bf16.mxu0 0
      %2408 = vmatpush1.bf16.msra.mxu0 0
      %2409 = vmatprep.subr.bf16.mxu0 0
      %2410 = vmatpush1.bf16.msra.mxu0 0
      %2411 = vmatprep.subr.bf16.mxu0 0
      %2412 = vmatpush1.bf16.msra.mxu0 0
      %2413 = vmatprep.subr.bf16.mxu0 0
      %2414 = vmatpush1.bf16.msra.mxu0 0
      %2415 = vmatprep.subr.bf16.mxu0 0
      %2416 = vmatpush1.bf16.msra.mxu0 0
      %2417 = vmatprep.subr.bf16.mxu0 0
      %2418 = vmatpush1.bf16.msra.mxu0 0
      %2419 = vmatprep.subr.bf16.mxu0 0
      %2420 = vmatpush1.bf16.msra.mxu0 0
      %2421 = vmatprep.subr.bf16.mxu0 0
      %2422 = vmatpush1.bf16.msra.mxu0 0
      %2423 = vmatprep.subr.bf16.mxu0 0
      %2424 = vmatpush1.bf16.msra.mxu0 0
      %2425 = vmatprep.subr.bf16.mxu0 0
      %2426 = vmatpush1.bf16.msra.mxu0 0
      %2427 = vmatprep.subr.bf16.mxu0 0
      %2428 = vmatpush1.bf16.msra.mxu0 0
      %2429 = vmatprep.subr.bf16.mxu0 0
      %2430 = vmatpush1.bf16.msra.mxu0 0
      %2431 = vmatprep.subr.bf16.mxu0 0
      %2432 = vmatpush1.bf16.msra.mxu0 0
      %2433 = vmatprep.subr.bf16.mxu0 0
      %2434 = vmatpush1.bf16.msra.mxu0 0
      %2435 = vmatprep.subr.bf16.mxu0 0
      %2436 = vmatpush1.bf16.msra.mxu0 0
      %2437 = vmatprep.mubr.bf16.mxu0 0
      %2438 = vmatmul.mubr.bf16.gmra.mrb[0].mxu0 %v2388
      %v2439 = vpop.f32.mrb[0].mxu0
      %v2440 = vadd.f32 0.0, %v2439
      %v2441 = vpop.f32.mrb[0].mxu0
      %v2442 = vpop.f32.mrb[0].mxu0
      %v2443 = vadd.f32 0.0, %v2442
      %v2444 = vpop.f32.mrb[0].mxu0
      %2445 = vmatprep.mubr.bf16.mxu0 0
      %2446 = vmatmul.mubr.bf16.gmra.mrb[0].mxu0 %v2391
      %v2447 = vpop.f32.mrb[0].mxu0
      %v2448 = vadd.f32 0.0, %v2447
      %v2449 = vpop.f32.mrb[0].mxu0
      %v2450 = vpop.f32.mrb[0].mxu0
      %v2451 = vadd.f32 0.0, %v2450
      %v2452 = vpop.f32.mrb[0].mxu0
      %2453 = vmatprep.mubr.bf16.mxu0 0
      %2454 = vmatmul.mubr.bf16.gmra.mrb[0].mxu0 %v2394
      %v2455 = vpop.f32.mrb[0].mxu0
      %v2456 = vadd.f32 0.0, %v2455
      %v2457 = vpop.f32.mrb[0].mxu0
      %v2458 = vpop.f32.mrb[0].mxu0
      %v2459 = vadd.f32 0.0, %v2458
      %v2460 = vpop.f32.mrb[0].mxu0
      %2461 = vmatprep.mubr.bf16.mxu0 0
      %2462 = vmatmul.mubr.bf16.gmra.mrb[0].mxu0 %v2397
      %v2463 = vpop.f32.mrb[0].mxu0
      %v2464 = vadd.f32 0.0, %v2463
      %v2465 = vpop.f32.mrb[0].mxu0
      %v2466 = vpop.f32.mrb[0].mxu0
      %v2467 = vadd.f32 0.0, %v2466
      %v2468 = vpop.f32.mrb[0].mxu0
      %2469 = vmatprep.mubr.bf16.mxu0 0
      %2470 = vmatmul.mubr.bf16.gmra.mrb[0].mxu0 %v2400
      %v2471 = vpop.f32.mrb[0].mxu0
      %v2472 = vadd.f32 0.0, %v2471
      %v2473 = vpop.f32.mrb[0].mxu0
      %v2474 = vpop.f32.mrb[0].mxu0
      %v2475 = vadd.f32 0.0, %v2474
      %v2476 = vpop.f32.mrb[0].mxu0
      %2477 = vdwg.mxu0
      %v2478 = vadd.f32 %v2360, %v2440
      %v2479 = vadd.f32 %v2361, %v2443
      %v2480 = vadd.f32 %v2362, %v2448
      %v2481 = vadd.f32 %v2363, %v2451
      %v2482 = vadd.f32 %v2364, %v2456
      %v2483 = vadd.f32 %v2365, %v2459
      %v2484 = vadd.f32 %v2366, %v2464
      %v2485 = vadd.f32 %v2367, %v2467
      %v2486 = vadd.f32 %v2368, %v2472
      %v2487 = vadd.f32 %v2369, %v2475
      %v2488 = vld [vmem:[%s273 + $0x126] sm:$0xff]
      %v2489 = vld [vmem:[%s273 + $0x12e] sm:$0xff]
      %v2490 = vld [vmem:[%s273 + $0x136] sm:$0xff]
      %v2491 = vld [vmem:[%s273 + $0x13e] sm:$0xff]
      %v2492 = vld [vmem:[%s273 + $0x146] sm:$0xff]
      %v2493 = vld [vmem:[%s273 + $0x14e] sm:$0xff]
      %v2494 = vld [vmem:[%s273 + $0x156] sm:$0xff]
      %v2495 = vld [vmem:[%s273 + $0x15e] sm:$0xff]
      %v2496 = vld [vmem:[%s273 + $0x166] sm:$0xff]
      %v2497 = vld [vmem:[%s273 + $0x16e] sm:$0xff]
      %v2498 = vpack.c.bf16 %v2489, %v2488
      %v2499 = vpack.c.bf16 %v2491, %v2490
      %v2500 = vpack.c.bf16 %v2493, %v2492
      %v2501 = vpack.c.bf16 %v2495, %v2494
      %v2502 = vpack.c.bf16 %v2497, %v2496
      %v2503 = vld [vmem:[%s3] sm:$0x3]
      %v2505 = vsel %vm313, %v2498, 0
      %v2508 = vsel %vm313, %v2499, 0
      %v2511 = vsel %vm313, %v2500, 0
      %v2514 = vsel %vm313, %v2501, 0
      %v2517 = vsel %vm313, %v2502, 0
      %v2520 = vsel %vm329, %v2503, 0
      %2522 = vmatprep.subr.bf16.mxu0 0
      %2523 = vmatpush1.bf16.msra.mxu0 %v2520
      %2524 = vmatprep.subr.bf16.mxu0 0
      %2525 = vmatpush1.bf16.msra.mxu0 0
      %2526 = vmatprep.subr.bf16.mxu0 0
      %2527 = vmatpush1.bf16.msra.mxu0 0
      %2528 = vmatprep.subr.bf16.mxu0 0
      %2529 = vmatpush1.bf16.msra.mxu0 0
      %2530 = vmatprep.subr.bf16.mxu0 0
      %2531 = vmatpush1.bf16.msra.mxu0 0
      %2532 = vmatprep.subr.bf16.mxu0 0
      %2533 = vmatpush1.bf16.msra.mxu0 0
      %2534 = vmatprep.subr.bf16.mxu0 0
      %2535 = vmatpush1.bf16.msra.mxu0 0
      %2536 = vmatprep.subr.bf16.mxu0 0
      %2537 = vmatpush1.bf16.msra.mxu0 0
      %2538 = vmatprep.subr.bf16.mxu0 0
      %2539 = vmatpush1.bf16.msra.mxu0 0
      %2540 = vmatprep.subr.bf16.mxu0 0
      %2541 = vmatpush1.bf16.msra.mxu0 0
      %2542 = vmatprep.subr.bf16.mxu0 0
      %2543 = vmatpush1.bf16.msra.mxu0 0
      %2544 = vmatprep.subr.bf16.mxu0 0
      %2545 = vmatpush1.bf16.msra.mxu0 0
      %2546 = vmatprep.subr.bf16.mxu0 0
      %2547 = vmatpush1.bf16.msra.mxu0 0
      %2548 = vmatprep.subr.bf16.mxu0 0
      %2549 = vmatpush1.bf16.msra.mxu0 0
      %2550 = vmatprep.subr.bf16.mxu0 0
      %2551 = vmatpush1.bf16.msra.mxu0 0
      %2552 = vmatprep.subr.bf16.mxu0 0
      %2553 = vmatpush1.bf16.msra.mxu0 0
      %2554 = vmatprep.mubr.bf16.mxu0 0
      %2555 = vmatmul.mubr.bf16.gmra.mrb[0].mxu0 %v2505
      %v2556 = vpop.f32.mrb[0].mxu0
      %v2557 = vadd.f32 0.0, %v2556
      %v2558 = vpop.f32.mrb[0].mxu0
      %v2559 = vpop.f32.mrb[0].mxu0
      %v2560 = vadd.f32 0.0, %v2559
      %v2561 = vpop.f32.mrb[0].mxu0
      %2562 = vmatprep.mubr.bf16.mxu0 0
      %2563 = vmatmul.mubr.bf16.gmra.mrb[0].mxu0 %v2508
      %v2564 = vpop.f32.mrb[0].mxu0
      %v2565 = vadd.f32 0.0, %v2564
      %v2566 = vpop.f32.mrb[0].mxu0
      %v2567 = vpop.f32.mrb[0].mxu0
      %v2568 = vadd.f32 0.0, %v2567
      %v2569 = vpop.f32.mrb[0].mxu0
      %2570 = vmatprep.mubr.bf16.mxu0 0
      %2571 = vmatmul.mubr.bf16.gmra.mrb[0].mxu0 %v2511
      %v2572 = vpop.f32.mrb[0].mxu0
      %v2573 = vadd.f32 0.0, %v2572
      %v2574 = vpop.f32.mrb[0].mxu0
      %v2575 = vpop.f32.mrb[0].mxu0
      %v2576 = vadd.f32 0.0, %v2575
      %v2577 = vpop.f32.mrb[0].mxu0
      %2578 = vmatprep.mubr.bf16.mxu0 0
      %2579 = vmatmul.mubr.bf16.gmra.mrb[0].mxu0 %v2514
      %v2580 = vpop.f32.mrb[0].mxu0
      %v2581 = vadd.f32 0.0, %v2580
      %v2582 = vpop.f32.mrb[0].mxu0
      %v2583 = vpop.f32.mrb[0].mxu0
      %v2584 = vadd.f32 0.0, %v2583
      %v2585 = vpop.f32.mrb[0].mxu0
      %2586 = vmatprep.mubr.bf16.mxu0 0
      %2587 = vmatmul.mubr.bf16.gmra.mrb[0].mxu0 %v2517
      %v2588 = vpop.f32.mrb[0].mxu0
      %v2589 = vadd.f32 0.0, %v2588
      %v2590 = vpop.f32.mrb[0].mxu0
      %v2591 = vpop.f32.mrb[0].mxu0
      %v2592 = vadd.f32 0.0, %v2591
      %v2593 = vpop.f32.mrb[0].mxu0
      %2594 = vdwg.mxu0
      %v2595 = vld [vmem:[%s5] sm:$0x1]
      %v2597 = vlaneseq
      %v2598 = vshrl.u32 %v2597, 7
      %v2599 = vsub.s32 0, %v2598
      %v2600 = vrot.slane %v2595, %v2599
      %v2602 = vadd.f32 %v2478, %v2600
      %v2603 = vadd.f32 %v2479, %v2600
      %v2604 = vadd.f32 %v2480, %v2600
      %v2605 = vadd.f32 %v2481, %v2600
      %v2606 = vadd.f32 %v2482, %v2600
      %v2607 = vadd.f32 %v2483, %v2600
      %v2608 = vadd.f32 %v2484, %v2600
      %v2609 = vadd.f32 %v2485, %v2600
      %v2610 = vadd.f32 %v2486, %v2600
      %v2611 = vadd.f32 %v2487, %v2600
      %v2612 = vadd.f32 %v2602, %v2557
      %v2613 = vadd.f32 %v2603, %v2560
      %v2614 = vadd.f32 %v2604, %v2565
      %v2615 = vadd.f32 %v2605, %v2568
      %v2616 = vadd.f32 %v2606, %v2573
      %v2617 = vadd.f32 %v2607, %v2576
      %v2618 = vadd.f32 %v2608, %v2581
      %v2619 = vadd.f32 %v2609, %v2584
      %v2620 = vadd.f32 %v2610, %v2589
      %v2621 = vadd.f32 %v2611, %v2592
      %v2622 = vmax.f32 %v2612, 0.0
      %v2623 = vmax.f32 %v2613, 0.0
      %v2624 = vmax.f32 %v2614, 0.0
      %v2625 = vmax.f32 %v2615, 0.0
      %v2626 = vmax.f32 %v2616, 0.0
      %v2627 = vmax.f32 %v2617, 0.0
      %v2628 = vmax.f32 %v2618, 0.0
      %v2629 = vmax.f32 %v2619, 0.0
      %v2630 = vmax.f32 %v2620, 0.0
      %v2631 = vmax.f32 %v2621, 0.0
      %2632 = vst.msk [vmem:[%s278] sm:$0xff] %vm1420, %v2622
      %2633 = vst.msk [vmem:[%s278 + $0x8] sm:$0xff] %vm1420, %v2623
      %2634 = vst.msk [vmem:[%s278 + $0x10] sm:$0xff] %vm1420, %v2624
      %2635 = vst.msk [vmem:[%s278 + $0x18] sm:$0xff] %vm1420, %v2625
      %2636 = vst.msk [vmem:[%s278 + $0x20] sm:$0xff] %vm1420, %v2626
      %2637 = vst.msk [vmem:[%s278 + $0x28] sm:$0xff] %vm1420, %v2627
      %2638 = vst.msk [vmem:[%s278 + $0x30] sm:$0xff] %vm1420, %v2628
      %2639 = vst.msk [vmem:[%s278 + $0x38] sm:$0xff] %vm1420, %v2629
      %2640 = vst.msk [vmem:[%s278 + $0x40] sm:$0xff] %vm1420, %v2630
      %2641 = vst.msk [vmem:[%s278 + $0x48] sm:$0xff] %vm1420, %v2631
      %p2642 = scmp.lt.s32.totalorder %s18, 1
      %s2643 = scalar_select %p2642, %s18, 1
      %s2644 = smul.addr %s2643, 10
      %s2645 = smul.addr %s2644, 8
      %s2646 = scalar_lea.vmem %s7, %s2645
      // Predicated region
      $region49: #{residual_block_forward.1} parent=47 // pred_check
        %p2647 = pneg %p188
      $region50: #{residual_block_forward.1} parent=47 // pred_check_branch
        %2649 = sbr.rel (%p2647) target = $region52
      $region51: #{residual_block_forward.1} parent=47 // pred_region
        _
      $region52: #{residual_block_forward.1} parent=47 // pred_fallthru
        _
    $region48: #{residual_block_forward.1} parent=5 // pred_fallthru
      _
    %p2650 = scmp.le.s32.totalorder 2, %s13
    // Predicated region
    $region53: #{residual_block_forward.1} parent=5 // pred_check
      %p2651 = pneg %p2650
    $region54: #{residual_block_forward.1} parent=5 // pred_check_branch
      %2653 = sbr.rel (%p2651) target = $region56
    $region55: #{residual_block_forward.1} parent=5 // pred_region
      %s2654 = ssub.s32 %s13, 2
      // Predicated region
      $region57: #{residual_block_forward.1} parent=55 // pred_check
        %p2655 = pneg %p194
      $region58: #{residual_block_forward.1} parent=55 // pred_check_branch
        %2657 = sbr.rel (%p2655) target = $region60
      $region59: #{residual_block_forward.1} parent=55 // pred_region
        %p2658 = scmp.lt.s32.totalorder %s19, 1
        %s2659 = scalar_select %p2658, %s19, 1
        %s2660 = smul.addr %s2659, 10
        %s2661 = smul.addr %s2660, 8
        %s2662 = scalar_lea.vmem %s7, %s2661
      $region60: #{residual_block_forward.1} parent=55 // pred_fallthru
        _
    $region56: #{residual_block_forward.1} parent=5 // pred_fallthru
      _
  $region6: #{residual_block_forward.1} parent=0 // loop_footer
    %s17 = sadd.s32 1, %s13
  $region7: #{residual_block_forward.1} parent=0 // loop_footer_branch
    %12 = sbr.rel target = $region3
  $region8: #{residual_block_forward.1} parent=0 // loop_exit
    _

</llo_original>
